<compile_context>
chip_gen: v7x
topology: tpu7x:2x2x1
jax: 0.10.0
libtpu: 0.0.40
codegen_flags: <defaults>
</compile_context>

<pallas_src>
import math
import jax
import jax.numpy as jnp
from jax import lax
from jax.experimental import pallas as pl
from jax.experimental.pallas import tpu as pltpu

_CHUNK = 128  # lane width of one spatial chunk of the conv + avg-pool reduction


def vcop_forward(clips, params, num_clips):
    """clips: (num_clips, B, C, T, H, W) float32 (NCTHW per clip)."""
    conv_w, conv_b, fc1_w, fc1_b, fc2_w, fc2_b = params
    nc, B, C, T, H, W = clips.shape
    assert nc == num_clips
    S = T * H * W
    F_ = conv_w.shape[1]
    hidden = fc1_w.shape[1]
    num_orders = fc2_w.shape[1]
    pair_idx = [(i, j) for i in range(num_clips) for j in range(i + 1, num_clips)]
    num_pairs = len(pair_idx)
    assert S % _CHUNK == 0, "T*H*W must be a multiple of 128"
    n_s = S // _CHUNK
    inv_s = 1.0 / S

    # ---- wrapper-side layout plumbing (jitted, one-time) ----
    x = clips.reshape(nc, B, C, S)                                  # S lane-dense, no transpose
    wp = jnp.broadcast_to(conv_w[:, :, None], (C, F_, _CHUNK))      # plain vreg operand in-kernel
    cb = jnp.broadcast_to(conv_b[:, None], (F_, _CHUNK))
    # split fc1 weight -> [top | bot] on N so pair features never need a lane concat
    w1c = jnp.concatenate([fc1_w[:F_], fc1_w[F_:]], axis=1).astype(jnp.bfloat16)   # (F, 2*hidden)
    b1 = fc1_b.reshape(1, hidden)
    # lane-dense fc2 weight: (num_pairs, num_orders, hidden)
    w2t = jnp.transpose(fc2_w.reshape(num_pairs, hidden, num_orders),
                        (0, 2, 1)).astype(jnp.bfloat16)
    b2 = fc2_b.reshape(1, num_orders)

    def kernel(x_ref, wp_ref, cb_ref, w1_ref, b1_ref, w2_ref, b2_ref,
               out_ref, feats_ref):
        # x_ref : (1, B, C, CHUNK)   wp_ref: (C, F, CHUNK)   cb_ref: (F, CHUNK)
        # w1_ref: (F, 2*hidden) bf16 b1_ref: (1, hidden)
        # w2_ref: (num_pairs, num_orders, hidden) bf16       b2_ref: (1, num_orders)
        # out_ref: (B, num_orders)   feats_ref: (nc, B, F) f32 VMEM scratch
        g = pl.program_id(0)    # clip index
        sc = pl.program_id(1)   # spatial-chunk index

        @pl.when(sc == 0)
        def _init():
            feats_ref[g] = jnp.zeros((B, F_), jnp.float32)

        # ---- pointwise conv + ReLU + partial avg-pool for this chunk (VPU/XLU) ----
        xc = x_ref[0]                                       # (B, C, CHUNK) f32
        rows = []
        for b in range(B):                                  # B is small & static
            y = xc[b, 0:1, :] * wp_ref[0]                   # (F, CHUNK)
            for c in range(1, C):
                y = y + xc[b, c:c + 1, :] * wp_ref[c]
            y = jnp.maximum(y + cb_ref[...], 0.0)           # conv bias + ReLU
            rows.append(jnp.sum(y, axis=-1).reshape(1, F_)) # lane reduce -> (1, F)
        feats_ref[g] = feats_ref[g] + jnp.concatenate(rows, axis=0)   # (B, F)

        # ---- VCOP head, only on the final grid step (features fully pooled) ----
        @pl.when(jnp.logical_and(g == nc - 1, sc == n_s - 1))
        def _head():
            allf = jnp.concatenate([feats_ref[i] for i in range(nc)], axis=0)
            allf = (allf * inv_s).astype(jnp.bfloat16)                 # (nc*B, F)
            # single w1 weight push for all clips
            h2 = jnp.dot(allf, w1_ref[...],
                         preferred_element_type=jnp.float32)           # (nc*B, 2*hidden)
            acc = jnp.zeros((B, num_orders), jnp.float32)
            for p, (i, j) in enumerate(pair_idx):
                hp = (h2[i * B:(i + 1) * B, :hidden]
                      + h2[j * B:(j + 1) * B, hidden:]
                      + b1_ref[...])                                    # (B, hidden)
                hp = jnp.maximum(hp, 0.0).astype(jnp.bfloat16)          # ReLU; dropout = id
                acc = acc + lax.dot_general(
                    hp, w2_ref[p],
                    dimension_numbers=(((1,), (1,)), ((), ())),
                    preferred_element_type=jnp.float32)                 # (B, num_orders)
            out_ref[...] = (acc + b2_ref[...]).astype(out_ref.dtype)

    return pl.pallas_call(
        kernel,
        out_shape=jax.ShapeDtypeStruct((B, num_orders), jnp.float32),
        grid=(nc, n_s),
        in_specs=[
            pl.BlockSpec((1, B, C, _CHUNK), lambda g, s: (g, 0, 0, s)),
            pl.BlockSpec((C, F_, _CHUNK), lambda g, s: (0, 0, 0)),
            pl.BlockSpec((F_, _CHUNK), lambda g, s: (0, 0)),
            pl.BlockSpec((F_, 2 * hidden), lambda g, s: (0, 0)),
            pl.BlockSpec((1, hidden), lambda g, s: (0, 0)),
            pl.BlockSpec((num_pairs, num_orders, hidden), lambda g, s: (0, 0, 0)),
            pl.BlockSpec((1, num_orders), lambda g, s: (0, 0)),
        ],
        out_specs=pl.BlockSpec((B, num_orders), lambda g, s: (0, 0)),
        scratch_shapes=[pltpu.VMEM((nc, B, F_), jnp.float32)],
        compiler_params=pltpu.CompilerParams(
            dimension_semantics=("arbitrary", "arbitrary")),
    )(x, wp, cb, w1c, b1, w2t, b2)


# ---------------------------------------------------------------------------
# Pure-JAX reference for validation (f32 throughout)
# ---------------------------------------------------------------------------
def vcop_reference(clips, params, num_clips):
    conv_w, conv_b, fc1_w, fc1_b, fc2_w, fc2_b = params
    nc, B, C, T, H, W = clips.shape
    x = clips.reshape(nc, B, C, T * H * W)
    y = jnp.maximum(jnp.einsum('nbcs,cf->nbsf', x, conv_w) + conv_b, 0.0)
    feats = jnp.mean(y, axis=2)                          # (nc, B, F)
    pairs = [jnp.concatenate([feats[i], feats[j]], axis=1)
             for i in range(num_clips) for j in range(i + 1, num_clips)]
    hs = [jnp.maximum(p @ fc1_w + fc1_b, 0.0) for p in pairs]
    h = jnp.concatenate(hs, axis=1)
    return h @ fc2_w + fc2_b


if __name__ == "__main__":
    # Small shapes consistent with the module
    num_clips = 3
    num_orders = math.factorial(num_clips)          # 6
    num_pairs = num_clips * (num_clips - 1) // 2    # 3
    feature_size = 128
    hidden = 512
    B, C, T, H, W = 2, 4, 4, 8, 8                   # S = 256

    key = jax.random.PRNGKey(0)
    k_clips, k_cw, k_cb, k_w1, k_b1, k_w2, k_b2 = jax.random.split(key, 7)

    clips = jax.random.normal(k_clips, (num_clips, B, C, T, H, W), jnp.float32)

    # Deterministic synthetic parameters (input-major linear weights: y = x @ W + b)
    conv_w = 0.1 * jax.random.normal(k_cw, (C, feature_size), jnp.float32)
    conv_b = 0.1 * jax.random.normal(k_cb, (feature_size,), jnp.float32)
    fc1_w = 0.05 * jax.random.normal(k_w1, (2 * feature_size, hidden), jnp.float32)
    fc1_b = 0.05 * jax.random.normal(k_b1, (hidden,), jnp.float32)
    fc2_w = 0.05 * jax.random.normal(k_w2, (hidden * num_pairs, num_orders), jnp.float32)
    fc2_b = 0.05 * jax.random.normal(k_b2, (num_orders,), jnp.float32)
    params = (conv_w, conv_b, fc1_w, fc1_b, fc2_w, fc2_b)

    fwd = jax.jit(lambda c, p: vcop_forward(c, p, num_clips))
    out = jax.block_until_ready(fwd(clips, params))
    ref = jax.block_until_ready(vcop_reference(clips, params, num_clips))

    assert out.shape == (B, num_orders), out.shape
    # Tolerance covers bf16 MXU weights (f32 accumulation) vs the f32 reference.
    assert jnp.allclose(out, ref, rtol=2e-2, atol=2e-2), (out, ref)
    print("KERNEL_OK")
</pallas_src>

<mosaic_0001>
module attributes {stable_mosaic.version = 11 : i64} {
  func.func @kernel(%arg0: i32, %arg1: i32, %arg2: memref<1x2x4x128xf32, #tpu.memory_space<vmem>>, %arg3: memref<4x128x128xf32, #tpu.memory_space<vmem>>, %arg4: memref<128x128xf32, #tpu.memory_space<vmem>>, %arg5: memref<128x1024xbf16, #tpu.memory_space<vmem>>, %arg6: memref<1x512xf32, #tpu.memory_space<vmem>>, %arg7: memref<3x6x512xbf16, #tpu.memory_space<vmem>>, %arg8: memref<1x6xf32, #tpu.memory_space<vmem>>, %arg9: memref<2x6xf32, #tpu.memory_space<vmem>>, %arg10: memref<3x2x128xf32, #tpu.memory_space<vmem>>) attributes {dimension_semantics = [#tpu.dimension_semantics<arbitrary>, #tpu.dimension_semantics<arbitrary>], iteration_bounds = array<i64: 3, 2>, scalar_prefetch = 0 : i64, scratch_operands = 1 : i64, tpu.core_type = #tpu.core_type<tc>, window_params = [{transform_indices = @transform_0, window_bounds = array<i64: 1, 2, 4, 128>}, {pipeline_mode = #tpu.pipeline_mode<synchronous>, transform_indices = @transform_1, window_bounds = array<i64: 4, 128, 128>}, {pipeline_mode = #tpu.pipeline_mode<synchronous>, transform_indices = @transform_2, window_bounds = array<i64: 128, 128>}, {pipeline_mode = #tpu.pipeline_mode<synchronous>, transform_indices = @transform_3, window_bounds = array<i64: 128, 1024>}, {pipeline_mode = #tpu.pipeline_mode<synchronous>, transform_indices = @transform_4, window_bounds = array<i64: 1, 512>}, {pipeline_mode = #tpu.pipeline_mode<synchronous>, transform_indices = @transform_5, window_bounds = array<i64: 3, 6, 512>}, {pipeline_mode = #tpu.pipeline_mode<synchronous>, transform_indices = @transform_6, window_bounds = array<i64: 1, 6>}, {pipeline_mode = #tpu.pipeline_mode<synchronous>, transform_indices = @transform_7, window_bounds = array<i64: 2, 6>}]} {
    %c0_i32 = arith.constant 0 : i32
    %0 = arith.cmpi eq, %arg1, %c0_i32 : i32
    %1 = arith.extui %0 : i1 to i32
    %c0_i32_0 = arith.constant 0 : i32
    %2 = arith.cmpi ne, %1, %c0_i32_0 : i32
    scf.if %2 {
      %cst_37 = arith.constant 0.000000e+00 : f32
      %85 = vector.broadcast %cst_37 : f32 to vector<2x128xf32>
      %86 = arith.index_cast %arg0 : i32 to index
      %c0_38 = arith.constant 0 : index
      %c0_39 = arith.constant 0 : index
      %87 = vector.load %arg10[%86, %c0_38, %c0_39] : memref<3x2x128xf32, #tpu.memory_space<vmem>>, vector<1x2x128xf32>
      %88 = vector.shape_cast %87 : vector<1x2x128xf32> to vector<2x128xf32>
      %89 = vector.shape_cast %85 : vector<2x128xf32> to vector<1x2x128xf32>
      tpu.vector_store %arg10[%86, %c0_38, %c0_39], %89 {strides = array<i32>} : memref<3x2x128xf32, #tpu.memory_space<vmem>>, vector<1x2x128xf32>,
    } else {
    }
    %c0 = arith.constant 0 : index
    %c0_1 = arith.constant 0 : index
    %c0_2 = arith.constant 0 : index
    %c0_3 = arith.constant 0 : index
    %3 = vector.load %arg2[%c0, %c0_1, %c0_2, %c0_3] : memref<1x2x4x128xf32, #tpu.memory_space<vmem>>, vector<1x2x4x128xf32>
    %4 = vector.shape_cast %3 : vector<1x2x4x128xf32> to vector<2x4x128xf32>
    %5 = vector.extract_strided_slice %4 {offsets = [0, 0, 0], sizes = [1, 1, 128], strides = [1, 1, 1]} : vector<2x4x128xf32> to vector<1x1x128xf32>
    %6 = vector.shape_cast %5 : vector<1x1x128xf32> to vector<1x128xf32>
    %c0_4 = arith.constant 0 : index
    %c0_5 = arith.constant 0 : index
    %c0_6 = arith.constant 0 : index
    %7 = vector.load %arg3[%c0_4, %c0_5, %c0_6] : memref<4x128x128xf32, #tpu.memory_space<vmem>>, vector<1x128x128xf32>
    %8 = vector.shape_cast %7 : vector<1x128x128xf32> to vector<128x128xf32>
    %9 = vector.broadcast %6 : vector<1x128xf32> to vector<128x128xf32>
    %10 = arith.mulf %9, %8 : vector<128x128xf32>
    %11 = vector.extract_strided_slice %4 {offsets = [0, 1, 0], sizes = [1, 1, 128], strides = [1, 1, 1]} : vector<2x4x128xf32> to vector<1x1x128xf32>
    %12 = vector.shape_cast %11 : vector<1x1x128xf32> to vector<1x128xf32>
    %c1 = arith.constant 1 : index
    %c0_7 = arith.constant 0 : index
    %c0_8 = arith.constant 0 : index
    %13 = vector.load %arg3[%c1, %c0_7, %c0_8] : memref<4x128x128xf32, #tpu.memory_space<vmem>>, vector<1x128x128xf32>
    %14 = vector.shape_cast %13 : vector<1x128x128xf32> to vector<128x128xf32>
    %15 = vector.broadcast %12 : vector<1x128xf32> to vector<128x128xf32>
    %16 = arith.mulf %15, %14 : vector<128x128xf32>
    %17 = arith.addf %10, %16 : vector<128x128xf32>
    %18 = vector.extract_strided_slice %4 {offsets = [0, 2, 0], sizes = [1, 1, 128], strides = [1, 1, 1]} : vector<2x4x128xf32> to vector<1x1x128xf32>
    %19 = vector.shape_cast %18 : vector<1x1x128xf32> to vector<1x128xf32>
    %c2 = arith.constant 2 : index
    %c0_9 = arith.constant 0 : index
    %c0_10 = arith.constant 0 : index
    %20 = vector.load %arg3[%c2, %c0_9, %c0_10] : memref<4x128x128xf32, #tpu.memory_space<vmem>>, vector<1x128x128xf32>
    %21 = vector.shape_cast %20 : vector<1x128x128xf32> to vector<128x128xf32>
    %22 = vector.broadcast %19 : vector<1x128xf32> to vector<128x128xf32>
    %23 = arith.mulf %22, %21 : vector<128x128xf32>
    %24 = arith.addf %17, %23 : vector<128x128xf32>
    %25 = vector.extract_strided_slice %4 {offsets = [0, 3, 0], sizes = [1, 1, 128], strides = [1, 1, 1]} : vector<2x4x128xf32> to vector<1x1x128xf32>
    %26 = vector.shape_cast %25 : vector<1x1x128xf32> to vector<1x128xf32>
    %c3 = arith.constant 3 : index
    %c0_11 = arith.constant 0 : index
    %c0_12 = arith.constant 0 : index
    %27 = vector.load %arg3[%c3, %c0_11, %c0_12] : memref<4x128x128xf32, #tpu.memory_space<vmem>>, vector<1x128x128xf32>
    %28 = vector.shape_cast %27 : vector<1x128x128xf32> to vector<128x128xf32>
    %29 = vector.broadcast %26 : vector<1x128xf32> to vector<128x128xf32>
    %30 = arith.mulf %29, %28 : vector<128x128xf32>
    %31 = arith.addf %24, %30 : vector<128x128xf32>
    %c0_13 = arith.constant 0 : index
    %c0_14 = arith.constant 0 : index
    %32 = vector.load %arg4[%c0_13, %c0_14] : memref<128x128xf32, #tpu.memory_space<vmem>>, vector<128x128xf32>
    %33 = arith.addf %31, %32 : vector<128x128xf32>
    %cst = arith.constant 0.000000e+00 : f32
    %34 = vector.broadcast %cst : f32 to vector<128x128xf32>
    %35 = arith.maximumf %33, %34 : vector<128x128xf32>
    %cst_15 = arith.constant dense<0.000000e+00> : vector<128xf32>
    %36 = vector.multi_reduction <add>, %35, %cst_15 [1] : vector<128x128xf32> to vector<128xf32>
    %37 = vector.shape_cast %36 : vector<128xf32> to vector<1x128xf32>
    %38 = vector.extract_strided_slice %4 {offsets = [1, 0, 0], sizes = [1, 1, 128], strides = [1, 1, 1]} : vector<2x4x128xf32> to vector<1x1x128xf32>
    %39 = vector.shape_cast %38 : vector<1x1x128xf32> to vector<1x128xf32>
    %c0_16 = arith.constant 0 : index
    %c0_17 = arith.constant 0 : index
    %c0_18 = arith.constant 0 : index
    %40 = vector.load %arg3[%c0_16, %c0_17, %c0_18] : memref<4x128x128xf32, #tpu.memory_space<vmem>>, vector<1x128x128xf32>
    %41 = vector.shape_cast %40 : vector<1x128x128xf32> to vector<128x128xf32>
    %42 = vector.broadcast %39 : vector<1x128xf32> to vector<128x128xf32>
    %43 = arith.mulf %42, %41 : vector<128x128xf32>
    %44 = vector.extract_strided_slice %4 {offsets = [1, 1, 0], sizes = [1, 1, 128], strides = [1, 1, 1]} : vector<2x4x128xf32> to vector<1x1x128xf32>
    %45 = vector.shape_cast %44 : vector<1x1x128xf32> to vector<1x128xf32>
    %c1_19 = arith.constant 1 : index
    %c0_20 = arith.constant 0 : index
    %c0_21 = arith.constant 0 : index
    %46 = vector.load %arg3[%c1_19, %c0_20, %c0_21] : memref<4x128x128xf32, #tpu.memory_space<vmem>>, vector<1x128x128xf32>
    %47 = vector.shape_cast %46 : vector<1x128x128xf32> to vector<128x128xf32>
    %48 = vector.broadcast %45 : vector<1x128xf32> to vector<128x128xf32>
    %49 = arith.mulf %48, %47 : vector<128x128xf32>
    %50 = arith.addf %43, %49 : vector<128x128xf32>
    %51 = vector.extract_strided_slice %4 {offsets = [1, 2, 0], sizes = [1, 1, 128], strides = [1, 1, 1]} : vector<2x4x128xf32> to vector<1x1x128xf32>
    %52 = vector.shape_cast %51 : vector<1x1x128xf32> to vector<1x128xf32>
    %c2_22 = arith.constant 2 : index
    %c0_23 = arith.constant 0 : index
    %c0_24 = arith.constant 0 : index
    %53 = vector.load %arg3[%c2_22, %c0_23, %c0_24] : memref<4x128x128xf32, #tpu.memory_space<vmem>>, vector<1x128x128xf32>
    %54 = vector.shape_cast %53 : vector<1x128x128xf32> to vector<128x128xf32>
    %55 = vector.broadcast %52 : vector<1x128xf32> to vector<128x128xf32>
    %56 = arith.mulf %55, %54 : vector<128x128xf32>
    %57 = arith.addf %50, %56 : vector<128x128xf32>
    %58 = vector.extract_strided_slice %4 {offsets = [1, 3, 0], sizes = [1, 1, 128], strides = [1, 1, 1]} : vector<2x4x128xf32> to vector<1x1x128xf32>
    %59 = vector.shape_cast %58 : vector<1x1x128xf32> to vector<1x128xf32>
    %c3_25 = arith.constant 3 : index
    %c0_26 = arith.constant 0 : index
    %c0_27 = arith.constant 0 : index
    %60 = vector.load %arg3[%c3_25, %c0_26, %c0_27] : memref<4x128x128xf32, #tpu.memory_space<vmem>>, vector<1x128x128xf32>
    %61 = vector.shape_cast %60 : vector<1x128x128xf32> to vector<128x128xf32>
    %62 = vector.broadcast %59 : vector<1x128xf32> to vector<128x128xf32>
    %63 = arith.mulf %62, %61 : vector<128x128xf32>
    %64 = arith.addf %57, %63 : vector<128x128xf32>
    %c0_28 = arith.constant 0 : index
    %c0_29 = arith.constant 0 : index
    %65 = vector.load %arg4[%c0_28, %c0_29] : memref<128x128xf32, #tpu.memory_space<vmem>>, vector<128x128xf32>
    %66 = arith.addf %64, %65 : vector<128x128xf32>
    %cst_30 = arith.constant 0.000000e+00 : f32
    %67 = vector.broadcast %cst_30 : f32 to vector<128x128xf32>
    %68 = arith.maximumf %66, %67 : vector<128x128xf32>
    %cst_31 = arith.constant dense<0.000000e+00> : vector<128xf32>
    %69 = vector.multi_reduction <add>, %68, %cst_31 [1] : vector<128x128xf32> to vector<128xf32>
    %70 = vector.shape_cast %69 : vector<128xf32> to vector<1x128xf32>
    %71 = arith.index_cast %arg0 : i32 to index
    %c0_32 = arith.constant 0 : index
    %c0_33 = arith.constant 0 : index
    %72 = vector.load %arg10[%71, %c0_32, %c0_33] : memref<3x2x128xf32, #tpu.memory_space<vmem>>, vector<1x2x128xf32>
    %73 = vector.shape_cast %72 : vector<1x2x128xf32> to vector<2x128xf32>
    %74 = tpu.concatenate %37, %70 in 0 : vector<1x128xf32>, vector<1x128xf32> -> vector<2x128xf32>
    %75 = arith.addf %73, %74 : vector<2x128xf32>
    %76 = arith.index_cast %arg0 : i32 to index
    %c0_34 = arith.constant 0 : index
    %c0_35 = arith.constant 0 : index
    %77 = vector.load %arg10[%76, %c0_34, %c0_35] : memref<3x2x128xf32, #tpu.memory_space<vmem>>, vector<1x2x128xf32>
    %78 = vector.shape_cast %77 : vector<1x2x128xf32> to vector<2x128xf32>
    %79 = vector.shape_cast %75 : vector<2x128xf32> to vector<1x2x128xf32>
    tpu.vector_store %arg10[%76, %c0_34, %c0_35], %79 {strides = array<i32>} : memref<3x2x128xf32, #tpu.memory_space<vmem>>, vector<1x2x128xf32>,
    %c2_i32 = arith.constant 2 : i32
    %80 = arith.cmpi eq, %arg0, %c2_i32 : i32
    %c1_i32 = arith.constant 1 : i32
    %81 = arith.cmpi eq, %arg1, %c1_i32 : i32
    %82 = arith.andi %80, %81 : i1
    %83 = arith.extui %82 : i1 to i32
    %c0_i32_36 = arith.constant 0 : i32
    %84 = arith.cmpi ne, %83, %c0_i32_36 : i32
    scf.if %84 {
      %c0_37 = arith.constant 0 : index
      %c0_38 = arith.constant 0 : index
      %c0_39 = arith.constant 0 : index
      %85 = vector.load %arg10[%c0_37, %c0_38, %c0_39] : memref<3x2x128xf32, #tpu.memory_space<vmem>>, vector<1x2x128xf32>
      %86 = vector.shape_cast %85 : vector<1x2x128xf32> to vector<2x128xf32>
      %c1_40 = arith.constant 1 : index
      %c0_41 = arith.constant 0 : index
      %c0_42 = arith.constant 0 : index
      %87 = vector.load %arg10[%c1_40, %c0_41, %c0_42] : memref<3x2x128xf32, #tpu.memory_space<vmem>>, vector<1x2x128xf32>
      %88 = vector.shape_cast %87 : vector<1x2x128xf32> to vector<2x128xf32>
      %c2_43 = arith.constant 2 : index
      %c0_44 = arith.constant 0 : index
      %c0_45 = arith.constant 0 : index
      %89 = vector.load %arg10[%c2_43, %c0_44, %c0_45] : memref<3x2x128xf32, #tpu.memory_space<vmem>>, vector<1x2x128xf32>
      %90 = vector.shape_cast %89 : vector<1x2x128xf32> to vector<2x128xf32>
      %91 = tpu.concatenate %86, %88, %90 in 0 : vector<2x128xf32>, vector<2x128xf32>, vector<2x128xf32> -> vector<6x128xf32>
      %cst_46 = arith.constant 3.906250e-03 : f32
      %92 = vector.broadcast %cst_46 : f32 to vector<6x128xf32>
      %93 = arith.mulf %91, %92 : vector<6x128xf32>
      %94 = arith.truncf %93 : vector<6x128xf32> to vector<6x128xbf16>
      %c0_47 = arith.constant 0 : index
      %c0_48 = arith.constant 0 : index
      %95 = vector.load %arg5[%c0_47, %c0_48] : memref<128x1024xbf16, #tpu.memory_space<vmem>>, vector<128x1024xbf16>
      %cst_49 = arith.constant dense<0.000000e+00> : vector<6x1024xf32>
      %96 = tpu.matmul %94, %95, %cst_49 {dimension_numbers = #tpu.dot_dimension_numbers<[1], [0], [0], [1], [0, 0, 1, 1], [], []>} : vector<6x128xbf16>, vector<128x1024xbf16>, vector<6x1024xf32> -> vector<6x1024xf32>
      %cst_50 = arith.constant 0.000000e+00 : f32
      %97 = vector.broadcast %cst_50 : f32 to vector<2x6xf32>
      %98 = vector.extract_strided_slice %96 {offsets = [0, 0], sizes = [2, 512], strides = [1, 1]} : vector<6x1024xf32> to vector<2x512xf32>
      %99 = vector.extract_strided_slice %96 {offsets = [2, 512], sizes = [2, 512], strides = [1, 1]} : vector<6x1024xf32> to vector<2x512xf32>
      %100 = arith.addf %98, %99 : vector<2x512xf32>
      %c0_51 = arith.constant 0 : index
      %c0_52 = arith.constant 0 : index
      %101 = vector.load %arg6[%c0_51, %c0_52] : memref<1x512xf32, #tpu.memory_space<vmem>>, vector<1x512xf32>
      %102 = vector.broadcast %101 : vector<1x512xf32> to vector<2x512xf32>
      %103 = arith.addf %100, %102 : vector<2x512xf32>
      %cst_53 = arith.constant 0.000000e+00 : f32
      %104 = vector.broadcast %cst_53 : f32 to vector<2x512xf32>
      %105 = arith.maximumf %103, %104 : vector<2x512xf32>
      %106 = arith.truncf %105 : vector<2x512xf32> to vector<2x512xbf16>
      %c0_54 = arith.constant 0 : index
      %c0_55 = arith.constant 0 : index
      %c0_56 = arith.constant 0 : index
      %107 = vector.load %arg7[%c0_54, %c0_55, %c0_56] : memref<3x6x512xbf16, #tpu.memory_space<vmem>>, vector<1x6x512xbf16>
      %108 = vector.shape_cast %107 : vector<1x6x512xbf16> to vector<6x512xbf16>
      %cst_57 = arith.constant dense<0.000000e+00> : vector<2x6xf32>
      %109 = tpu.matmul %106, %108, %cst_57 {dimension_numbers = #tpu.dot_dimension_numbers<[1], [1], [0], [0], [0, 0, 1, 0], [], []>} : vector<2x512xbf16>, vector<6x512xbf16>, vector<2x6xf32> -> vector<2x6xf32>
      %110 = arith.addf %97, %109 : vector<2x6xf32>
      %111 = vector.extract_strided_slice %96 {offsets = [0, 0], sizes = [2, 512], strides = [1, 1]} : vector<6x1024xf32> to vector<2x512xf32>
      %112 = vector.extract_strided_slice %96 {offsets = [4, 512], sizes = [2, 512], strides = [1, 1]} : vector<6x1024xf32> to vector<2x512xf32>
      %113 = arith.addf %111, %112 : vector<2x512xf32>
      %c0_58 = arith.constant 0 : index
      %c0_59 = arith.constant 0 : index
      %114 = vector.load %arg6[%c0_58, %c0_59] : memref<1x512xf32, #tpu.memory_space<vmem>>, vector<1x512xf32>
      %115 = vector.broadcast %114 : vector<1x512xf32> to vector<2x512xf32>
      %116 = arith.addf %113, %115 : vector<2x512xf32>
      %cst_60 = arith.constant 0.000000e+00 : f32
      %117 = vector.broadcast %cst_60 : f32 to vector<2x512xf32>
      %118 = arith.maximumf %116, %117 : vector<2x512xf32>
      %119 = arith.truncf %118 : vector<2x512xf32> to vector<2x512xbf16>
      %c1_61 = arith.constant 1 : index
      %c0_62 = arith.constant 0 : index
      %c0_63 = arith.constant 0 : index
      %120 = vector.load %arg7[%c1_61, %c0_62, %c0_63] : memref<3x6x512xbf16, #tpu.memory_space<vmem>>, vector<1x6x512xbf16>
      %121 = vector.shape_cast %120 : vector<1x6x512xbf16> to vector<6x512xbf16>
      %cst_64 = arith.constant dense<0.000000e+00> : vector<2x6xf32>
      %122 = tpu.matmul %119, %121, %cst_64 {dimension_numbers = #tpu.dot_dimension_numbers<[1], [1], [0], [0], [0, 0, 1, 0], [], []>} : vector<2x512xbf16>, vector<6x512xbf16>, vector<2x6xf32> -> vector<2x6xf32>
      %123 = arith.addf %110, %122 : vector<2x6xf32>
      %124 = vector.extract_strided_slice %96 {offsets = [2, 0], sizes = [2, 512], strides = [1, 1]} : vector<6x1024xf32> to vector<2x512xf32>
      %125 = vector.extract_strided_slice %96 {offsets = [4, 512], sizes = [2, 512], strides = [1, 1]} : vector<6x1024xf32> to vector<2x512xf32>
      %126 = arith.addf %124, %125 : vector<2x512xf32>
      %c0_65 = arith.constant 0 : index
      %c0_66 = arith.constant 0 : index
      %127 = vector.load %arg6[%c0_65, %c0_66] : memref<1x512xf32, #tpu.memory_space<vmem>>, vector<1x512xf32>
      %128 = vector.broadcast %127 : vector<1x512xf32> to vector<2x512xf32>
      %129 = arith.addf %126, %128 : vector<2x512xf32>
      %cst_67 = arith.constant 0.000000e+00 : f32
      %130 = vector.broadcast %cst_67 : f32 to vector<2x512xf32>
      %131 = arith.maximumf %129, %130 : vector<2x512xf32>
      %132 = arith.truncf %131 : vector<2x512xf32> to vector<2x512xbf16>
      %c2_68 = arith.constant 2 : index
      %c0_69 = arith.constant 0 : index
      %c0_70 = arith.constant 0 : index
      %133 = vector.load %arg7[%c2_68, %c0_69, %c0_70] : memref<3x6x512xbf16, #tpu.memory_space<vmem>>, vector<1x6x512xbf16>
      %134 = vector.shape_cast %133 : vector<1x6x512xbf16> to vector<6x512xbf16>
      %cst_71 = arith.constant dense<0.000000e+00> : vector<2x6xf32>
      %135 = tpu.matmul %132, %134, %cst_71 {dimension_numbers = #tpu.dot_dimension_numbers<[1], [1], [0], [0], [0, 0, 1, 0], [], []>} : vector<2x512xbf16>, vector<6x512xbf16>, vector<2x6xf32> -> vector<2x6xf32>
      %136 = arith.addf %123, %135 : vector<2x6xf32>
      %c0_72 = arith.constant 0 : index
      %c0_73 = arith.constant 0 : index
      %137 = vector.load %arg8[%c0_72, %c0_73] : memref<1x6xf32, #tpu.memory_space<vmem>>, vector<1x6xf32>
      %138 = vector.broadcast %137 : vector<1x6xf32> to vector<2x6xf32>
      %139 = arith.addf %136, %138 : vector<2x6xf32>
      %c0_74 = arith.constant 0 : index
      %c0_75 = arith.constant 0 : index
      %140 = vector.load %arg9[%c0_74, %c0_75] : memref<2x6xf32, #tpu.memory_space<vmem>>, vector<2x6xf32>
      tpu.vector_store %arg9[%c0_74, %c0_75], %139 {strides = array<i32>} : memref<2x6xf32, #tpu.memory_space<vmem>>, vector<2x6xf32>,
    } else {
    }
    return
  }
  func.func @transform_0(%arg0: i32, %arg1: i32) -> (i32, i32, i32, i32) {
    %c0_i32 = arith.constant 0 : i32
    %c0_i32_0 = arith.constant 0 : i32
    %c0_i32_1 = arith.constant 0 : i32
    return %arg0, %c0_i32, %c0_i32_0, %arg1 : i32, i32, i32, i32
  }
  func.func @transform_1(%arg0: i32, %arg1: i32) -> (i32, i32, i32) {
    %c0_i32 = arith.constant 0 : i32
    %c0_i32_0 = arith.constant 0 : i32
    %c0_i32_1 = arith.constant 0 : i32
    %c0_i32_2 = arith.constant 0 : i32
    return %c0_i32, %c0_i32_0, %c0_i32_1 : i32, i32, i32
  }
  func.func @transform_2(%arg0: i32, %arg1: i32) -> (i32, i32) {
    %c0_i32 = arith.constant 0 : i32
    %c0_i32_0 = arith.constant 0 : i32
    %c0_i32_1 = arith.constant 0 : i32
    return %c0_i32, %c0_i32_0 : i32, i32
  }
  func.func @transform_3(%arg0: i32, %arg1: i32) -> (i32, i32) {
    %c0_i32 = arith.constant 0 : i32
    %c0_i32_0 = arith.constant 0 : i32
    %c0_i32_1 = arith.constant 0 : i32
    return %c0_i32, %c0_i32_0 : i32, i32
  }
  func.func @transform_4(%arg0: i32, %arg1: i32) -> (i32, i32) {
    %c0_i32 = arith.constant 0 : i32
    %c0_i32_0 = arith.constant 0 : i32
    %c0_i32_1 = arith.constant 0 : i32
    return %c0_i32, %c0_i32_0 : i32, i32
  }
  func.func @transform_5(%arg0: i32, %arg1: i32) -> (i32, i32, i32) {
    %c0_i32 = arith.constant 0 : i32
    %c0_i32_0 = arith.constant 0 : i32
    %c0_i32_1 = arith.constant 0 : i32
    %c0_i32_2 = arith.constant 0 : i32
    return %c0_i32, %c0_i32_0, %c0_i32_1 : i32, i32, i32
  }
  func.func @transform_6(%arg0: i32, %arg1: i32) -> (i32, i32) {
    %c0_i32 = arith.constant 0 : i32
    %c0_i32_0 = arith.constant 0 : i32
    %c0_i32_1 = arith.constant 0 : i32
    return %c0_i32, %c0_i32_0 : i32, i32
  }
  func.func @transform_7(%arg0: i32, %arg1: i32) -> (i32, i32) {
    %c0_i32 = arith.constant 0 : i32
    %c0_i32_0 = arith.constant 0 : i32
    %c0_i32_1 = arith.constant 0 : i32
    return %c0_i32, %c0_i32_0 : i32, i32
  }
}

</mosaic_0001>

<llo_original>
// kernel: _lambda_.1
$region0: #{_lambda_.1}
  #allocation0 [shape = 'u32[]', space=smem, size = 0x4, offset = 0x4, fixed_abs, tag = 'smem constant byte address 0x4 - core index']
  #allocation1 [shape = 'u32[144,128]{1,0:T(1,128)}', space=vmem, size = 0x12000, scoped, tag = 'internal scratch']
  #allocation2 [shape = 'f32[3,2,128]{2,1,0:T(2,128)}', space=vmem, size = 0xc00, scoped, tag = 'scratch operand']
  %s0 = inlined_call_operand.vmem [shape: f32[3,2,4,256], index: 0, kind: input, shape index: {}]
  %s1 = inlined_call_operand.vmem [shape: f32[4,128,128], index: 1, kind: input, shape index: {}]
  %s2 = inlined_call_operand.vmem [shape: f32[128,128], index: 2, kind: input, shape index: {}]
  %s3 = inlined_call_operand.vmem [shape: bf16[128,1024], index: 3, kind: input, shape index: {}]
  %s4 = inlined_call_operand.vmem [shape: f32[1,512], index: 4, kind: input, shape index: {}]
  %s5 = inlined_call_operand.vmem [shape: bf16[3,6,512], index: 5, kind: input, shape index: {}]
  %s6 = inlined_call_operand.vmem [shape: f32[1,6], index: 6, kind: input, shape index: {}]
  %s7 = inlined_call_operand.hbm [shape: f32[2,6], index: 7, kind: output, shape index: {}]
  %s8 = sld [smem:[#allocation0]]
  $region110: #{_lambda_.1} parent=0
    _
  %s10 = ssub.s32 1, %s8
  %s11 = scalar_select 0, %s10, %s8
  $region1: #{_lambda_.1} parent=0
    #allocation3 [shape = 'u8[8192]{0}', space=vmem, size = 0x2000, scoped, tag = 'input window, operand 0']
    #allocation4 [shape = 'u8[1024]{0}', space=vmem, size = 0x400, scoped, tag = 'output window, operand 0, single buffered']
    #allocation5 [shape = 's32[2]{0}', space=sflag, size = 0x8, scoped, tag = 'scoped memory for _lambda_.1']
    %12 = vsyncpa [#allocation5], 0
    loop: start=0, step=1, limit=8
    $region2: #{_lambda_.1} parent=1 // loop_pre_header
      _
    $region3: #{_lambda_.1} parent=1 // loop_header
      %s14 = sphi 0, %s18
      %p15 = scmp.ge.s32.totalorder %s14, 8
      %s21 = sphi 0, %s33
      %s22 = sphi 0, %s29
      %s23 = sphi 0, %s21
      %s24 = sphi 0, %s22
      %s25 = sphi 0, %s23
      %s26 = sphi 0, %s24
      %s38 = sphi 0, %s40
      %s41 = sphi 0, %s38
      %s42 = sphi 0, %s41
      %s58 = sphi 0, %s42
      %s62 = sphi 0, %s62
      %s64 = sphi 0, %s62
      %s65 = sphi 0, %s64
      %s79 = sphi 0, %s65
      %s83 = sphi 0, %s83
      %s85 = sphi 0, %s83
      %s86 = sphi 0, %s85
      %s100 = sphi 0, %s86
      %s104 = sphi 0, %s104
      %s106 = sphi 0, %s104
      %s107 = sphi 0, %s106
      %s121 = sphi 0, %s107
      %s125 = sphi 0, %s125
      %s127 = sphi 0, %s125
      %s128 = sphi 0, %s127
      %s142 = sphi 0, %s128
      %s146 = sphi 0, %s146
      %s148 = sphi 0, %s146
      %s149 = sphi 0, %s148
      %s163 = sphi 0, %s149
      %s167 = sphi 0, %s167
      %s169 = sphi 0, %s167
      %s170 = sphi 0, %s169
      %s184 = sphi 0, %s170
      %s188 = sphi 0, %s188
      %s190 = sphi 0, %s188
      %s191 = sphi 0, %s190
      %s205 = sphi 0, %s191
    $region4: #{_lambda_.1} parent=1 // loop_header_branch
      %17 = sbr.rel (%p15) target = $region8
    $region5: #{_lambda_.1} parent=1 // loop_body
      %s19 = ssub.s32 %s14, 1
      %s20 = ssub.s32 %s14, 2
      %s27 = sadd.s32 1, %s22
      %p28 = scmp.ge.s32.totalorder %s27, 2
      %s29 = scalar_select %p28, 0, %s27
      %s30 = sadd.s32 1, %s21
      %s31 = scalar_select %p28, %s30, %s21
      %p32 = scmp.ge.s32.totalorder %s31, 3
      %s33 = scalar_select %p32, 0, %s31
      %s34 = ssub.s32 %s21, %s33
      %s35 = ssub.s32 %s22, %s29
      %s36 = sor.u32 %s34, %s35
      %p37 = scmp.eq.s32.totalorder %s36, 0
      %s39 = sadd.s32 %s38, 1
      %s40 = scalar_select %p37, %s38, %s39
      %p43 = pneg %p37
      %p44 = scmp.eq.s32.totalorder %s14, 5
      %p45 = por %p43, %p44
      %p46 = scmp.ne.s32.totalorder %s38, %s41
      %p47 = scmp.eq.s32.totalorder %s14, 0
      %p48 = por %p46, %p47
      %p49 = scmp.ne.s32.totalorder %s38, %s41
      %p50 = scmp.eq.s32.totalorder %s19, 5
      %p51 = por %p49, %p50
      %p52 = scmp.ne.s32.totalorder %s41, %s42
      %p53 = scmp.eq.s32.totalorder %s19, 0
      %p54 = por %p52, %p53
      %p55 = scmp.ne.s32.totalorder %s41, %s42
      %p56 = scmp.eq.s32.totalorder %s20, 5
      %p57 = por %p55, %p56
      %p59 = scmp.ne.s32.totalorder %s42, %s58
      %p60 = scmp.eq.s32.totalorder %s20, 0
      %p61 = por %p59, %p60
      %s63 = sadd.s32 %s62, 1
      %p66 = scmp.eq.s32.totalorder %s14, 5
      %p67 = scmp.ne.s32.totalorder %s62, %s64
      %p68 = scmp.eq.s32.totalorder %s14, 0
      %p69 = por %p67, %p68
      %p70 = scmp.ne.s32.totalorder %s62, %s64
      %p71 = scmp.eq.s32.totalorder %s19, 5
      %p72 = por %p70, %p71
      %p73 = scmp.ne.s32.totalorder %s64, %s65
      %p74 = scmp.eq.s32.totalorder %s19, 0
      %p75 = por %p73, %p74
      %p76 = scmp.ne.s32.totalorder %s64, %s65
      %p77 = scmp.eq.s32.totalorder %s20, 5
      %p78 = por %p76, %p77
      %p80 = scmp.ne.s32.totalorder %s65, %s79
      %p81 = scmp.eq.s32.totalorder %s20, 0
      %p82 = por %p80, %p81
      %s84 = sadd.s32 %s83, 1
      %p87 = scmp.eq.s32.totalorder %s14, 5
      %p88 = scmp.ne.s32.totalorder %s83, %s85
      %p89 = scmp.eq.s32.totalorder %s14, 0
      %p90 = por %p88, %p89
      %p91 = scmp.ne.s32.totalorder %s83, %s85
      %p92 = scmp.eq.s32.totalorder %s19, 5
      %p93 = por %p91, %p92
      %p94 = scmp.ne.s32.totalorder %s85, %s86
      %p95 = scmp.eq.s32.totalorder %s19, 0
      %p96 = por %p94, %p95
      %p97 = scmp.ne.s32.totalorder %s85, %s86
      %p98 = scmp.eq.s32.totalorder %s20, 5
      %p99 = por %p97, %p98
      %p101 = scmp.ne.s32.totalorder %s86, %s100
      %p102 = scmp.eq.s32.totalorder %s20, 0
      %p103 = por %p101, %p102
      %s105 = sadd.s32 %s104, 1
      %p108 = scmp.eq.s32.totalorder %s14, 5
      %p109 = scmp.ne.s32.totalorder %s104, %s106
      %p110 = scmp.eq.s32.totalorder %s14, 0
      %p111 = por %p109, %p110
      %p112 = scmp.ne.s32.totalorder %s104, %s106
      %p113 = scmp.eq.s32.totalorder %s19, 5
      %p114 = por %p112, %p113
      %p115 = scmp.ne.s32.totalorder %s106, %s107
      %p116 = scmp.eq.s32.totalorder %s19, 0
      %p117 = por %p115, %p116
      %p118 = scmp.ne.s32.totalorder %s106, %s107
      %p119 = scmp.eq.s32.totalorder %s20, 5
      %p120 = por %p118, %p119
      %p122 = scmp.ne.s32.totalorder %s107, %s121
      %p123 = scmp.eq.s32.totalorder %s20, 0
      %p124 = por %p122, %p123
      %s126 = sadd.s32 %s125, 1
      %p129 = scmp.eq.s32.totalorder %s14, 5
      %p130 = scmp.ne.s32.totalorder %s125, %s127
      %p131 = scmp.eq.s32.totalorder %s14, 0
      %p132 = por %p130, %p131
      %p133 = scmp.ne.s32.totalorder %s125, %s127
      %p134 = scmp.eq.s32.totalorder %s19, 5
      %p135 = por %p133, %p134
      %p136 = scmp.ne.s32.totalorder %s127, %s128
      %p137 = scmp.eq.s32.totalorder %s19, 0
      %p138 = por %p136, %p137
      %p139 = scmp.ne.s32.totalorder %s127, %s128
      %p140 = scmp.eq.s32.totalorder %s20, 5
      %p141 = por %p139, %p140
      %p143 = scmp.ne.s32.totalorder %s128, %s142
      %p144 = scmp.eq.s32.totalorder %s20, 0
      %p145 = por %p143, %p144
      %s147 = sadd.s32 %s146, 1
      %p150 = scmp.eq.s32.totalorder %s14, 5
      %p151 = scmp.ne.s32.totalorder %s146, %s148
      %p152 = scmp.eq.s32.totalorder %s14, 0
      %p153 = por %p151, %p152
      %p154 = scmp.ne.s32.totalorder %s146, %s148
      %p155 = scmp.eq.s32.totalorder %s19, 5
      %p156 = por %p154, %p155
      %p157 = scmp.ne.s32.totalorder %s148, %s149
      %p158 = scmp.eq.s32.totalorder %s19, 0
      %p159 = por %p157, %p158
      %p160 = scmp.ne.s32.totalorder %s148, %s149
      %p161 = scmp.eq.s32.totalorder %s20, 5
      %p162 = por %p160, %p161
      %p164 = scmp.ne.s32.totalorder %s149, %s163
      %p165 = scmp.eq.s32.totalorder %s20, 0
      %p166 = por %p164, %p165
      %s168 = sadd.s32 %s167, 1
      %p171 = scmp.eq.s32.totalorder %s14, 5
      %p172 = scmp.ne.s32.totalorder %s167, %s169
      %p173 = scmp.eq.s32.totalorder %s14, 0
      %p174 = por %p172, %p173
      %p175 = scmp.ne.s32.totalorder %s167, %s169
      %p176 = scmp.eq.s32.totalorder %s19, 5
      %p177 = por %p175, %p176
      %p178 = scmp.ne.s32.totalorder %s169, %s170
      %p179 = scmp.eq.s32.totalorder %s19, 0
      %p180 = por %p178, %p179
      %p181 = scmp.ne.s32.totalorder %s169, %s170
      %p182 = scmp.eq.s32.totalorder %s20, 5
      %p183 = por %p181, %p182
      %p185 = scmp.ne.s32.totalorder %s170, %s184
      %p186 = scmp.eq.s32.totalorder %s20, 0
      %p187 = por %p185, %p186
      %s189 = sadd.s32 %s188, 1
      %p192 = scmp.eq.s32.totalorder %s14, 5
      %p193 = scmp.ne.s32.totalorder %s188, %s190
      %p194 = scmp.eq.s32.totalorder %s14, 0
      %p195 = por %p193, %p194
      %p196 = scmp.ne.s32.totalorder %s188, %s190
      %p197 = scmp.eq.s32.totalorder %s19, 5
      %p198 = por %p196, %p197
      %p199 = scmp.ne.s32.totalorder %s190, %s191
      %p200 = scmp.eq.s32.totalorder %s19, 0
      %p201 = por %p199, %p200
      %p202 = scmp.ne.s32.totalorder %s190, %s191
      %p203 = scmp.eq.s32.totalorder %s20, 5
      %p204 = por %p202, %p203
      %p206 = scmp.ne.s32.totalorder %s191, %s205
      %p207 = scmp.eq.s32.totalorder %s20, 0
      %p208 = por %p206, %p207
      %p209 = scmp.le.s32.totalorder 1, %s14
      %p210 = scmp.lt.s32.totalorder %s14, 7
      %p211 = pnand %p209, %p210
      %p212 = pneg %p211
      // Predicated region
      $region9: #{_lambda_.1} parent=5 // pred_check
        _
      $region10: #{_lambda_.1} parent=5 // pred_check_branch
        %214 = sbr.rel (%p211) target = $region12
      $region11: #{_lambda_.1} parent=5 // pred_region
        %s215 = ssub.s32 %s14, 1
        // Predicated region
        $region13: #{_lambda_.1} parent=11 // pred_check
          %p216 = pneg %p75
        $region14: #{_lambda_.1} parent=11 // pred_check_branch
          %218 = sbr.rel (%p216) target = $region16
        $region15: #{_lambda_.1} parent=11 // pred_region
          _
        $region16: #{_lambda_.1} parent=11 // pred_fallthru
          _
        // Predicated region
        $region17: #{_lambda_.1} parent=11 // pred_check
          %p219 = pneg %p96
        $region18: #{_lambda_.1} parent=11 // pred_check_branch
          %221 = sbr.rel (%p219) target = $region20
        $region19: #{_lambda_.1} parent=11 // pred_region
          _
        $region20: #{_lambda_.1} parent=11 // pred_fallthru
          _
        // Predicated region
        $region21: #{_lambda_.1} parent=11 // pred_check
          %p222 = pneg %p117
        $region22: #{_lambda_.1} parent=11 // pred_check_branch
          %224 = sbr.rel (%p222) target = $region24
        $region23: #{_lambda_.1} parent=11 // pred_region
          _
        $region24: #{_lambda_.1} parent=11 // pred_fallthru
          _
        // Predicated region
        $region25: #{_lambda_.1} parent=11 // pred_check
          %p225 = pneg %p138
        $region26: #{_lambda_.1} parent=11 // pred_check_branch
          %227 = sbr.rel (%p225) target = $region28
        $region27: #{_lambda_.1} parent=11 // pred_region
          _
        $region28: #{_lambda_.1} parent=11 // pred_fallthru
          _
        // Predicated region
        $region29: #{_lambda_.1} parent=11 // pred_check
          %p228 = pneg %p159
        $region30: #{_lambda_.1} parent=11 // pred_check_branch
          %230 = sbr.rel (%p228) target = $region32
        $region31: #{_lambda_.1} parent=11 // pred_region
          _
        $region32: #{_lambda_.1} parent=11 // pred_fallthru
          _
        // Predicated region
        $region33: #{_lambda_.1} parent=11 // pred_check
          %p231 = pneg %p180
        $region34: #{_lambda_.1} parent=11 // pred_check_branch
          %233 = sbr.rel (%p231) target = $region36
        $region35: #{_lambda_.1} parent=11 // pred_region
          _
        $region36: #{_lambda_.1} parent=11 // pred_fallthru
          _
      $region12: #{_lambda_.1} parent=5 // pred_fallthru
        _
      %p234 = scmp.lt.s32.totalorder %s14, 6
      // Predicated region
      $region37: #{_lambda_.1} parent=5 // pred_check
        %p235 = pneg %p234
      $region38: #{_lambda_.1} parent=5 // pred_check_branch
        %237 = sbr.rel (%p235) target = $region40
      $region39: #{_lambda_.1} parent=5 // pred_region
        // Predicated region
        $region41: #{_lambda_.1} parent=39 // pred_check
          %p238 = pneg %p48
        $region42: #{_lambda_.1} parent=39 // pred_check_branch
          %240 = sbr.rel (%p238) target = $region44
        $region43: #{_lambda_.1} parent=39 // pred_region
          %s241 = sand.u32 %s38, 1
          %s242 = sand.u32 %s38, 1
          %s243 = smul.addr %s242, 8
          %s244 = scalar_lea.vmem [#allocation3], %s243
          %s245 = smul.addr %s21, 4
          %s246 = sadd.s32 %s22, %s245
          %s247 = smul.addr %s246, 4
          %s248 = scalar_lea.vmem %s0, %s247
          // Predicated region
          $region45: #{_lambda_.1} parent=43 // pred_check
            _
          $region46: #{_lambda_.1} parent=43 // pred_check_branch
            %250 = sbr.rel (0) target = $region48
          $region47: #{_lambda_.1} parent=43 // pred_region
            // Predicated region
            $region49: #{_lambda_.1} parent=47 // pred_check
              _
            $region50: #{_lambda_.1} parent=47 // pred_check_branch
              %252 = sbr.rel target = $region52
            $region51: #{_lambda_.1} parent=47 // pred_region
              // Predicated region
              $region64: #{_lambda_.1} parent=51 // pred_check
                _
              $region65: #{_lambda_.1} parent=51 // pred_check_branch
                %269 = sbr.rel (0) target = $region67
              $region66: #{_lambda_.1} parent=51 // pred_region
                loop: start=0, step=1, limit=1
                $region68: #{_lambda_.1} parent=66 // loop_pre_header
                  _
                $region69: #{_lambda_.1} parent=66 // loop_header
                  %s271 = sphi 0, %s275
                  %p272 = scmp.ge.s32.totalorder %s271, 1
                  %s276 = sphi %s248, %s248
                  %s277 = sphi %s244, %s244
                $region70: #{_lambda_.1} parent=66 // loop_header_branch
                  %274 = sbr.rel (%p272) target = $region74
                $region71: #{_lambda_.1} parent=66 // loop_body
                  _
                $region72: #{_lambda_.1} parent=66 // loop_footer
                  %s275 = sadd.s32 1, %s271
                $region73: #{_lambda_.1} parent=66 // loop_footer_branch
                  %270 = sbr.rel target = $region69
                $region74: #{_lambda_.1} parent=66 // loop_exit
                  _
                loop: start=0, step=1, limit=1
                $region75: #{_lambda_.1} parent=66 // loop_pre_header
                  _
                $region76: #{_lambda_.1} parent=66 // loop_header
                  %s280 = sphi 0, %s284
                  %p281 = scmp.ge.s32.totalorder %s280, 1
                  %s285 = sphi %s248, %s248
                  %s286 = sphi %s244, %s244
                $region77: #{_lambda_.1} parent=66 // loop_header_branch
                  %283 = sbr.rel (%p281) target = $region81
                $region78: #{_lambda_.1} parent=66 // loop_body
                  %v287 = vld [vmem:[%s285] sm:$0xf]
                  %288 = vst [vmem:[%s286] sm:$0xf] %v287
                  %v289 = vld [vmem:[%s285 + $0x8] sm:$0xf]
                  %290 = vst [vmem:[%s286 + $0x4] sm:$0xf] %v289
                $region79: #{_lambda_.1} parent=66 // loop_footer
                  %s284 = sadd.s32 1, %s280
                $region80: #{_lambda_.1} parent=66 // loop_footer_branch
                  %279 = sbr.rel target = $region76
                $region81: #{_lambda_.1} parent=66 // loop_exit
                  _
              $region67: #{_lambda_.1} parent=51 // pred_fallthru
                _
            $region52: #{_lambda_.1} parent=47 // pred_fallthru
              _
            // Predicated region
            $region53: #{_lambda_.1} parent=47 // pred_check
              _
            $region54: #{_lambda_.1} parent=47 // pred_check_branch
              %254 = sbr.rel (0) target = $region56
            $region55: #{_lambda_.1} parent=47 // pred_region
              loop: start=0, step=1, limit=1
              $region57: #{_lambda_.1} parent=55 // loop_pre_header
                _
              $region58: #{_lambda_.1} parent=55 // loop_header
                %s257 = sphi 0, %s261
                %p258 = scmp.ge.s32.totalorder %s257, 1
                %s262 = sphi %s248, %s248
                %s263 = sphi %s244, %s244
              $region59: #{_lambda_.1} parent=55 // loop_header_branch
                %260 = sbr.rel (%p258) target = $region63
              $region60: #{_lambda_.1} parent=55 // loop_body
                %v264 = vld [vmem:[%s262] sm:$0xf]
                %265 = vst [vmem:[%s263] sm:$0xf] %v264
                %v266 = vld [vmem:[%s262 + $0x8] sm:$0xf]
                %267 = vst [vmem:[%s263 + $0x4] sm:$0xf] %v266
              $region61: #{_lambda_.1} parent=55 // loop_footer
                %s261 = sadd.s32 1, %s257
              $region62: #{_lambda_.1} parent=55 // loop_footer_branch
                %256 = sbr.rel target = $region58
              $region63: #{_lambda_.1} parent=55 // loop_exit
                _
            $region56: #{_lambda_.1} parent=47 // pred_fallthru
              _
          $region48: #{_lambda_.1} parent=43 // pred_fallthru
            _
          %291 = vnop
        $region44: #{_lambda_.1} parent=39 // pred_fallthru
          _
      $region40: #{_lambda_.1} parent=5 // pred_fallthru
        _
      %p292 = scmp.le.s32.totalorder 1, %s14
      %p293 = scmp.lt.s32.totalorder %s14, 7
      %p294 = pnand %p292, %p293
      %p295 = pneg %p294
      // Predicated region
      $region82: #{_lambda_.1} parent=5 // pred_check
        _
      $region83: #{_lambda_.1} parent=5 // pred_check_branch
        %297 = sbr.rel (%p294) target = $region85
      $region84: #{_lambda_.1} parent=5 // pred_region
        %s298 = ssub.s32 %s14, 1
        %s299 = sand.u32 %s41, 1
        %s300 = sand.u32 %s41, 1
        %s301 = smul.addr %s300, 8
        %s302 = scalar_lea.vmem [#allocation3], %s301
        // Predicated region
        $region86: #{_lambda_.1} parent=84 // pred_check
          %p303 = pneg %p54
        $region87: #{_lambda_.1} parent=84 // pred_check_branch
          %305 = sbr.rel (%p303) target = $region89
        $region88: #{_lambda_.1} parent=84 // pred_region
          _
        $region89: #{_lambda_.1} parent=84 // pred_fallthru
          _
        %s306 = sand.u32 %s41, 1
        %s307 = sand.u32 %s41, 1
        %s308 = smul.addr %s307, 8
        %s309 = scalar_lea.vmem [#allocation3], %s308
        %p310 = pneg %p54
        %p311 = pneg %p51
        %p312 = pneg %p75
        %p313 = pneg %p72
        %p314 = pneg %p96
        %p315 = pneg %p93
        %p316 = pneg %p117
        %p317 = pneg %p114
        %p318 = pneg %p138
        %p319 = pneg %p135
        %p320 = pneg %p159
        %p321 = pneg %p156
        %p322 = pneg %p180
        %p323 = pneg %p177
        %p324 = pneg %p201
        %p325 = pneg %p198
        %p327 = scmp.eq.s32.totalorder %s24, 0
        // Predicated region
        $region90: #{_lambda_.1} parent=84 // pred_check
          %p328 = pneg %p327
        $region91: #{_lambda_.1} parent=84 // pred_check_branch
          %330 = sbr.rel (%p328) target = $region93
        $region92: #{_lambda_.1} parent=84 // pred_region
          %s331 = smul.u32 %s23, 2
          %s332 = scalar_lea.vmem [#allocation2], %s331
          %333 = vst [vmem:[%s332] sm:$0x3] 0.0
        $region93: #{_lambda_.1} parent=84 // pred_fallthru
          _
        %v334 = vld [vmem:[%s302] sm:$0xf]
        %v335 = vld [vmem:[%s302 + $0x4] sm:$0xf]
        %v336 = vld [vmem:[%s1] sm:$0xff]
        %v337 = vld [vmem:[%s1 + $0x8] sm:$0xff]
        %v338 = vld [vmem:[%s1 + $0x10] sm:$0xff]
        %v339 = vld [vmem:[%s1 + $0x18] sm:$0xff]
        %v340 = vld [vmem:[%s1 + $0x20] sm:$0xff]
        %v341 = vld [vmem:[%s1 + $0x28] sm:$0xff]
        %v342 = vld [vmem:[%s1 + $0x30] sm:$0xff]
        %v343 = vld [vmem:[%s1 + $0x38] sm:$0xff]
        %v344 = vld [vmem:[%s1 + $0x40] sm:$0xff]
        %v345 = vld [vmem:[%s1 + $0x48] sm:$0xff]
        %v346 = vld [vmem:[%s1 + $0x50] sm:$0xff]
        %v347 = vld [vmem:[%s1 + $0x58] sm:$0xff]
        %v348 = vld [vmem:[%s1 + $0x60] sm:$0xff]
        %v349 = vld [vmem:[%s1 + $0x68] sm:$0xff]
        %v350 = vld [vmem:[%s1 + $0x70] sm:$0xff]
        %v351 = vld [vmem:[%s1 + $0x78] sm:$0xff]
        %v352 = vlaneseq
        %v353 = vshrl.u32 %v352, 7
        %v354 = vsub.s32 0, %v353
        %v355 = vrot.slane %v334, %v354
        %v356 = vmul.f32 %v355, %v336
        %v357 = vmul.f32 %v355, %v337
        %v358 = vmul.f32 %v355, %v338
        %v359 = vmul.f32 %v355, %v339
        %v360 = vmul.f32 %v355, %v340
        %v361 = vmul.f32 %v355, %v341
        %v362 = vmul.f32 %v355, %v342
        %v363 = vmul.f32 %v355, %v343
        %v364 = vmul.f32 %v355, %v344
        %v365 = vmul.f32 %v355, %v345
        %v366 = vmul.f32 %v355, %v346
        %v367 = vmul.f32 %v355, %v347
        %v368 = vmul.f32 %v355, %v348
        %v369 = vmul.f32 %v355, %v349
        %v370 = vmul.f32 %v355, %v350
        %v371 = vmul.f32 %v355, %v351
        %s372 = scalar_lea.vmem %s1, 128
        %v373 = vld [vmem:[%s372] sm:$0xff]
        %v374 = vld [vmem:[%s372 + $0x8] sm:$0xff]
        %v375 = vld [vmem:[%s372 + $0x10] sm:$0xff]
        %v376 = vld [vmem:[%s372 + $0x18] sm:$0xff]
        %v377 = vld [vmem:[%s372 + $0x20] sm:$0xff]
        %v378 = vld [vmem:[%s372 + $0x28] sm:$0xff]
        %v379 = vld [vmem:[%s372 + $0x30] sm:$0xff]
        %v380 = vld [vmem:[%s372 + $0x38] sm:$0xff]
        %v381 = vld [vmem:[%s372 + $0x40] sm:$0xff]
        %v382 = vld [vmem:[%s372 + $0x48] sm:$0xff]
        %v383 = vld [vmem:[%s372 + $0x50] sm:$0xff]
        %v384 = vld [vmem:[%s372 + $0x58] sm:$0xff]
        %v385 = vld [vmem:[%s372 + $0x60] sm:$0xff]
        %v386 = vld [vmem:[%s372 + $0x68] sm:$0xff]
        %v387 = vld [vmem:[%s372 + $0x70] sm:$0xff]
        %v388 = vld [vmem:[%s372 + $0x78] sm:$0xff]
        %v389 = vlaneseq
        %v390 = vshrl.u32 %v389, 7
        %v391 = vsub.s32 1, %v390
        %v392 = vrot.slane %v334, %v391
        %v393 = vmul.f32 %v392, %v373
        %v394 = vmul.f32 %v392, %v374
        %v395 = vmul.f32 %v392, %v375
        %v396 = vmul.f32 %v392, %v376
        %v397 = vmul.f32 %v392, %v377
        %v398 = vmul.f32 %v392, %v378
        %v399 = vmul.f32 %v392, %v379
        %v400 = vmul.f32 %v392, %v380
        %v401 = vmul.f32 %v392, %v381
        %v402 = vmul.f32 %v392, %v382
        %v403 = vmul.f32 %v392, %v383
        %v404 = vmul.f32 %v392, %v384
        %v405 = vmul.f32 %v392, %v385
        %v406 = vmul.f32 %v392, %v386
        %v407 = vmul.f32 %v392, %v387
        %v408 = vmul.f32 %v392, %v388
        %v409 = vadd.f32 %v356, %v393
        %v410 = vadd.f32 %v357, %v394
        %v411 = vadd.f32 %v358, %v395
        %v412 = vadd.f32 %v359, %v396
        %v413 = vadd.f32 %v360, %v397
        %v414 = vadd.f32 %v361, %v398
        %v415 = vadd.f32 %v362, %v399
        %v416 = vadd.f32 %v363, %v400
        %v417 = vadd.f32 %v364, %v401
        %v418 = vadd.f32 %v365, %v402
        %v419 = vadd.f32 %v366, %v403
        %v420 = vadd.f32 %v367, %v404
        %v421 = vadd.f32 %v368, %v405
        %v422 = vadd.f32 %v369, %v406
        %v423 = vadd.f32 %v370, %v407
        %v424 = vadd.f32 %v371, %v408
        %s425 = scalar_lea.vmem %s1, 256
        %v426 = vld [vmem:[%s425] sm:$0xff]
        %v427 = vld [vmem:[%s425 + $0x8] sm:$0xff]
        %v428 = vld [vmem:[%s425 + $0x10] sm:$0xff]
        %v429 = vld [vmem:[%s425 + $0x18] sm:$0xff]
        %v430 = vld [vmem:[%s425 + $0x20] sm:$0xff]
        %v431 = vld [vmem:[%s425 + $0x28] sm:$0xff]
        %v432 = vld [vmem:[%s425 + $0x30] sm:$0xff]
        %v433 = vld [vmem:[%s425 + $0x38] sm:$0xff]
        %v434 = vld [vmem:[%s425 + $0x40] sm:$0xff]
        %v435 = vld [vmem:[%s425 + $0x48] sm:$0xff]
        %v436 = vld [vmem:[%s425 + $0x50] sm:$0xff]
        %v437 = vld [vmem:[%s425 + $0x58] sm:$0xff]
        %v438 = vld [vmem:[%s425 + $0x60] sm:$0xff]
        %v439 = vld [vmem:[%s425 + $0x68] sm:$0xff]
        %v440 = vld [vmem:[%s425 + $0x70] sm:$0xff]
        %v441 = vld [vmem:[%s425 + $0x78] sm:$0xff]
        %v442 = vlaneseq
        %v443 = vshrl.u32 %v442, 7
        %v444 = vsub.s32 2, %v443
        %v445 = vrot.slane %v334, %v444
        %v446 = vmul.f32 %v445, %v426
        %v447 = vmul.f32 %v445, %v427
        %v448 = vmul.f32 %v445, %v428
        %v449 = vmul.f32 %v445, %v429
        %v450 = vmul.f32 %v445, %v430
        %v451 = vmul.f32 %v445, %v431
        %v452 = vmul.f32 %v445, %v432
        %v453 = vmul.f32 %v445, %v433
        %v454 = vmul.f32 %v445, %v434
        %v455 = vmul.f32 %v445, %v435
        %v456 = vmul.f32 %v445, %v436
        %v457 = vmul.f32 %v445, %v437
        %v458 = vmul.f32 %v445, %v438
        %v459 = vmul.f32 %v445, %v439
        %v460 = vmul.f32 %v445, %v440
        %v461 = vmul.f32 %v445, %v441
        %v462 = vadd.f32 %v409, %v446
        %v463 = vadd.f32 %v410, %v447
        %v464 = vadd.f32 %v411, %v448
        %v465 = vadd.f32 %v412, %v449
        %v466 = vadd.f32 %v413, %v450
        %v467 = vadd.f32 %v414, %v451
        %v468 = vadd.f32 %v415, %v452
        %v469 = vadd.f32 %v416, %v453
        %v470 = vadd.f32 %v417, %v454
        %v471 = vadd.f32 %v418, %v455
        %v472 = vadd.f32 %v419, %v456
        %v473 = vadd.f32 %v420, %v457
        %v474 = vadd.f32 %v421, %v458
        %v475 = vadd.f32 %v422, %v459
        %v476 = vadd.f32 %v423, %v460
        %v477 = vadd.f32 %v424, %v461
        %s478 = scalar_lea.vmem %s1, 384
        %v479 = vld [vmem:[%s478] sm:$0xff]
        %v480 = vld [vmem:[%s478 + $0x8] sm:$0xff]
        %v481 = vld [vmem:[%s478 + $0x10] sm:$0xff]
        %v482 = vld [vmem:[%s478 + $0x18] sm:$0xff]
        %v483 = vld [vmem:[%s478 + $0x20] sm:$0xff]
        %v484 = vld [vmem:[%s478 + $0x28] sm:$0xff]
        %v485 = vld [vmem:[%s478 + $0x30] sm:$0xff]
        %v486 = vld [vmem:[%s478 + $0x38] sm:$0xff]
        %v487 = vld [vmem:[%s478 + $0x40] sm:$0xff]
        %v488 = vld [vmem:[%s478 + $0x48] sm:$0xff]
        %v489 = vld [vmem:[%s478 + $0x50] sm:$0xff]
        %v490 = vld [vmem:[%s478 + $0x58] sm:$0xff]
        %v491 = vld [vmem:[%s478 + $0x60] sm:$0xff]
        %v492 = vld [vmem:[%s478 + $0x68] sm:$0xff]
        %v493 = vld [vmem:[%s478 + $0x70] sm:$0xff]
        %v494 = vld [vmem:[%s478 + $0x78] sm:$0xff]
        %v495 = vlaneseq
        %v496 = vshrl.u32 %v495, 7
        %v497 = vsub.s32 3, %v496
        %v498 = vrot.slane %v334, %v497
        %v499 = vmul.f32 %v498, %v479
        %v500 = vmul.f32 %v498, %v480
        %v501 = vmul.f32 %v498, %v481
        %v502 = vmul.f32 %v498, %v482
        %v503 = vmul.f32 %v498, %v483
        %v504 = vmul.f32 %v498, %v484
        %v505 = vmul.f32 %v498, %v485
        %v506 = vmul.f32 %v498, %v486
        %v507 = vmul.f32 %v498, %v487
        %v508 = vmul.f32 %v498, %v488
        %v509 = vmul.f32 %v498, %v489
        %v510 = vmul.f32 %v498, %v490
        %v511 = vmul.f32 %v498, %v491
        %v512 = vmul.f32 %v498, %v492
        %v513 = vmul.f32 %v498, %v493
        %v514 = vmul.f32 %v498, %v494
        %v515 = vadd.f32 %v462, %v499
        %v516 = vadd.f32 %v463, %v500
        %v517 = vadd.f32 %v464, %v501
        %v518 = vadd.f32 %v465, %v502
        %v519 = vadd.f32 %v466, %v503
        %v520 = vadd.f32 %v467, %v504
        %v521 = vadd.f32 %v468, %v505
        %v522 = vadd.f32 %v469, %v506
        %v523 = vadd.f32 %v470, %v507
        %v524 = vadd.f32 %v471, %v508
        %v525 = vadd.f32 %v472, %v509
        %v526 = vadd.f32 %v473, %v510
        %v527 = vadd.f32 %v474, %v511
        %v528 = vadd.f32 %v475, %v512
        %v529 = vadd.f32 %v476, %v513
        %v530 = vadd.f32 %v477, %v514
        %v531 = vld [vmem:[%s2] sm:$0xff]
        %v532 = vld [vmem:[%s2 + $0x8] sm:$0xff]
        %v533 = vld [vmem:[%s2 + $0x10] sm:$0xff]
        %v534 = vld [vmem:[%s2 + $0x18] sm:$0xff]
        %v535 = vld [vmem:[%s2 + $0x20] sm:$0xff]
        %v536 = vld [vmem:[%s2 + $0x28] sm:$0xff]
        %v537 = vld [vmem:[%s2 + $0x30] sm:$0xff]
        %v538 = vld [vmem:[%s2 + $0x38] sm:$0xff]
        %v539 = vld [vmem:[%s2 + $0x40] sm:$0xff]
        %v540 = vld [vmem:[%s2 + $0x48] sm:$0xff]
        %v541 = vld [vmem:[%s2 + $0x50] sm:$0xff]
        %v542 = vld [vmem:[%s2 + $0x58] sm:$0xff]
        %v543 = vld [vmem:[%s2 + $0x60] sm:$0xff]
        %v544 = vld [vmem:[%s2 + $0x68] sm:$0xff]
        %v545 = vld [vmem:[%s2 + $0x70] sm:$0xff]
        %v546 = vld [vmem:[%s2 + $0x78] sm:$0xff]
        %v547 = vadd.f32 %v515, %v531
        %v548 = vadd.f32 %v516, %v532
        %v549 = vadd.f32 %v517, %v533
        %v550 = vadd.f32 %v518, %v534
        %v551 = vadd.f32 %v519, %v535
        %v552 = vadd.f32 %v520, %v536
        %v553 = vadd.f32 %v521, %v537
        %v554 = vadd.f32 %v522, %v538
        %v555 = vadd.f32 %v523, %v539
        %v556 = vadd.f32 %v524, %v540
        %v557 = vadd.f32 %v525, %v541
        %v558 = vadd.f32 %v526, %v542
        %v559 = vadd.f32 %v527, %v543
        %v560 = vadd.f32 %v528, %v544
        %v561 = vadd.f32 %v529, %v545
        %v562 = vadd.f32 %v530, %v546
        %v563 = vmax.f32 %v547, 0.0
        %v564 = vmax.f32 %v548, 0.0
        %v565 = vmax.f32 %v549, 0.0
        %v566 = vmax.f32 %v550, 0.0
        %v567 = vmax.f32 %v551, 0.0
        %v568 = vmax.f32 %v552, 0.0
        %v569 = vmax.f32 %v553, 0.0
        %v570 = vmax.f32 %v554, 0.0
        %v571 = vmax.f32 %v555, 0.0
        %v572 = vmax.f32 %v556, 0.0
        %v573 = vmax.f32 %v557, 0.0
        %v574 = vmax.f32 %v558, 0.0
        %v575 = vmax.f32 %v559, 0.0
        %v576 = vmax.f32 %v560, 0.0
        %v577 = vmax.f32 %v561, 0.0
        %v578 = vmax.f32 %v562, 0.0
        %579 = vadd.xlane.f32.xlu0 %v563
        %v580 = vpop.xlane.xlu0 %579
        %581 = vadd.xlane.f32.xlu0 %v564
        %v582 = vpop.xlane.xlu0 %581
        %583 = vadd.xlane.f32.xlu0 %v565
        %v584 = vpop.xlane.xlu0 %583
        %585 = vadd.xlane.f32.xlu0 %v566
        %v586 = vpop.xlane.xlu0 %585
        %587 = vadd.xlane.f32.xlu0 %v567
        %v588 = vpop.xlane.xlu0 %587
        %589 = vadd.xlane.f32.xlu0 %v568
        %v590 = vpop.xlane.xlu0 %589
        %591 = vadd.xlane.f32.xlu0 %v569
        %v592 = vpop.xlane.xlu0 %591
        %593 = vadd.xlane.f32.xlu0 %v570
        %v594 = vpop.xlane.xlu0 %593
        %595 = vadd.xlane.f32.xlu0 %v571
        %v596 = vpop.xlane.xlu0 %595
        %597 = vadd.xlane.f32.xlu0 %v572
        %v598 = vpop.xlane.xlu0 %597
        %599 = vadd.xlane.f32.xlu0 %v573
        %v600 = vpop.xlane.xlu0 %599
        %601 = vadd.xlane.f32.xlu0 %v574
        %v602 = vpop.xlane.xlu0 %601
        %603 = vadd.xlane.f32.xlu0 %v575
        %v604 = vpop.xlane.xlu0 %603
        %605 = vadd.xlane.f32.xlu0 %v576
        %v606 = vpop.xlane.xlu0 %605
        %607 = vadd.xlane.f32.xlu0 %v577
        %v608 = vpop.xlane.xlu0 %607
        %609 = vadd.xlane.f32.xlu0 %v578
        %v610 = vpop.xlane.xlu0 %609
        %v611 = vlaneseq
        %v612 = vshrl.u32 %v611, 7
        %v613 = vsub.s32 0, %v612
        %v614 = vrot.slane %v335, %v613
        %v615 = vmul.f32 %v614, %v336
        %v616 = vmul.f32 %v614, %v337
        %v617 = vmul.f32 %v614, %v338
        %v618 = vmul.f32 %v614, %v339
        %v619 = vmul.f32 %v614, %v340
        %v620 = vmul.f32 %v614, %v341
        %v621 = vmul.f32 %v614, %v342
        %v622 = vmul.f32 %v614, %v343
        %v623 = vmul.f32 %v614, %v344
        %v624 = vmul.f32 %v614, %v345
        %v625 = vmul.f32 %v614, %v346
        %v626 = vmul.f32 %v614, %v347
        %v627 = vmul.f32 %v614, %v348
        %v628 = vmul.f32 %v614, %v349
        %v629 = vmul.f32 %v614, %v350
        %v630 = vmul.f32 %v614, %v351
        %v631 = vlaneseq
        %v632 = vshrl.u32 %v631, 7
        %v633 = vsub.s32 1, %v632
        %v634 = vrot.slane %v335, %v633
        %v635 = vmul.f32 %v634, %v373
        %v636 = vmul.f32 %v634, %v374
        %v637 = vmul.f32 %v634, %v375
        %v638 = vmul.f32 %v634, %v376
        %v639 = vmul.f32 %v634, %v377
        %v640 = vmul.f32 %v634, %v378
        %v641 = vmul.f32 %v634, %v379
        %v642 = vmul.f32 %v634, %v380
        %v643 = vmul.f32 %v634, %v381
        %v644 = vmul.f32 %v634, %v382
        %v645 = vmul.f32 %v634, %v383
        %v646 = vmul.f32 %v634, %v384
        %v647 = vmul.f32 %v634, %v385
        %v648 = vmul.f32 %v634, %v386
        %v649 = vmul.f32 %v634, %v387
        %v650 = vmul.f32 %v634, %v388
        %v651 = vadd.f32 %v615, %v635
        %v652 = vadd.f32 %v616, %v636
        %v653 = vadd.f32 %v617, %v637
        %v654 = vadd.f32 %v618, %v638
        %v655 = vadd.f32 %v619, %v639
        %v656 = vadd.f32 %v620, %v640
        %v657 = vadd.f32 %v621, %v641
        %v658 = vadd.f32 %v622, %v642
        %v659 = vadd.f32 %v623, %v643
        %v660 = vadd.f32 %v624, %v644
        %v661 = vadd.f32 %v625, %v645
        %v662 = vadd.f32 %v626, %v646
        %v663 = vadd.f32 %v627, %v647
        %v664 = vadd.f32 %v628, %v648
        %v665 = vadd.f32 %v629, %v649
        %v666 = vadd.f32 %v630, %v650
        %v667 = vlaneseq
        %v668 = vshrl.u32 %v667, 7
        %v669 = vsub.s32 2, %v668
        %v670 = vrot.slane %v335, %v669
        %v671 = vmul.f32 %v670, %v426
        %v672 = vmul.f32 %v670, %v427
        %v673 = vmul.f32 %v670, %v428
        %v674 = vmul.f32 %v670, %v429
        %v675 = vmul.f32 %v670, %v430
        %v676 = vmul.f32 %v670, %v431
        %v677 = vmul.f32 %v670, %v432
        %v678 = vmul.f32 %v670, %v433
        %v679 = vmul.f32 %v670, %v434
        %v680 = vmul.f32 %v670, %v435
        %v681 = vmul.f32 %v670, %v436
        %v682 = vmul.f32 %v670, %v437
        %v683 = vmul.f32 %v670, %v438
        %v684 = vmul.f32 %v670, %v439
        %v685 = vmul.f32 %v670, %v440
        %v686 = vmul.f32 %v670, %v441
        %v687 = vadd.f32 %v651, %v671
        %v688 = vadd.f32 %v652, %v672
        %v689 = vadd.f32 %v653, %v673
        %v690 = vadd.f32 %v654, %v674
        %v691 = vadd.f32 %v655, %v675
        %v692 = vadd.f32 %v656, %v676
        %v693 = vadd.f32 %v657, %v677
        %v694 = vadd.f32 %v658, %v678
        %v695 = vadd.f32 %v659, %v679
        %v696 = vadd.f32 %v660, %v680
        %v697 = vadd.f32 %v661, %v681
        %v698 = vadd.f32 %v662, %v682
        %v699 = vadd.f32 %v663, %v683
        %v700 = vadd.f32 %v664, %v684
        %v701 = vadd.f32 %v665, %v685
        %v702 = vadd.f32 %v666, %v686
        %v703 = vlaneseq
        %v704 = vshrl.u32 %v703, 7
        %v705 = vsub.s32 3, %v704
        %v706 = vrot.slane %v335, %v705
        %v707 = vmul.f32 %v706, %v479
        %v708 = vmul.f32 %v706, %v480
        %v709 = vmul.f32 %v706, %v481
        %v710 = vmul.f32 %v706, %v482
        %v711 = vmul.f32 %v706, %v483
        %v712 = vmul.f32 %v706, %v484
        %v713 = vmul.f32 %v706, %v485
        %v714 = vmul.f32 %v706, %v486
        %v715 = vmul.f32 %v706, %v487
        %v716 = vmul.f32 %v706, %v488
        %v717 = vmul.f32 %v706, %v489
        %v718 = vmul.f32 %v706, %v490
        %v719 = vmul.f32 %v706, %v491
        %v720 = vmul.f32 %v706, %v492
        %v721 = vmul.f32 %v706, %v493
        %v722 = vmul.f32 %v706, %v494
        %v723 = vadd.f32 %v687, %v707
        %v724 = vadd.f32 %v688, %v708
        %v725 = vadd.f32 %v689, %v709
        %v726 = vadd.f32 %v690, %v710
        %v727 = vadd.f32 %v691, %v711
        %v728 = vadd.f32 %v692, %v712
        %v729 = vadd.f32 %v693, %v713
        %v730 = vadd.f32 %v694, %v714
        %v731 = vadd.f32 %v695, %v715
        %v732 = vadd.f32 %v696, %v716
        %v733 = vadd.f32 %v697, %v717
        %v734 = vadd.f32 %v698, %v718
        %v735 = vadd.f32 %v699, %v719
        %v736 = vadd.f32 %v700, %v720
        %v737 = vadd.f32 %v701, %v721
        %v738 = vadd.f32 %v702, %v722
        %v739 = vadd.f32 %v723, %v531
        %v740 = vadd.f32 %v724, %v532
        %v741 = vadd.f32 %v725, %v533
        %v742 = vadd.f32 %v726, %v534
        %v743 = vadd.f32 %v727, %v535
        %v744 = vadd.f32 %v728, %v536
        %v745 = vadd.f32 %v729, %v537
        %v746 = vadd.f32 %v730, %v538
        %v747 = vadd.f32 %v731, %v539
        %v748 = vadd.f32 %v732, %v540
        %v749 = vadd.f32 %v733, %v541
        %v750 = vadd.f32 %v734, %v542
        %v751 = vadd.f32 %v735, %v543
        %v752 = vadd.f32 %v736, %v544
        %v753 = vadd.f32 %v737, %v545
        %v754 = vadd.f32 %v738, %v546
        %v755 = vmax.f32 %v739, 0.0
        %v756 = vmax.f32 %v740, 0.0
        %v757 = vmax.f32 %v741, 0.0
        %v758 = vmax.f32 %v742, 0.0
        %v759 = vmax.f32 %v743, 0.0
        %v760 = vmax.f32 %v744, 0.0
        %v761 = vmax.f32 %v745, 0.0
        %v762 = vmax.f32 %v746, 0.0
        %v763 = vmax.f32 %v747, 0.0
        %v764 = vmax.f32 %v748, 0.0
        %v765 = vmax.f32 %v749, 0.0
        %v766 = vmax.f32 %v750, 0.0
        %v767 = vmax.f32 %v751, 0.0
        %v768 = vmax.f32 %v752, 0.0
        %v769 = vmax.f32 %v753, 0.0
        %v770 = vmax.f32 %v754, 0.0
        %771 = vadd.xlane.f32.xlu0 %v755
        %v772 = vpop.xlane.xlu0 %771
        %773 = vadd.xlane.f32.xlu0 %v756
        %v774 = vpop.xlane.xlu0 %773
        %775 = vadd.xlane.f32.xlu0 %v757
        %v776 = vpop.xlane.xlu0 %775
        %777 = vadd.xlane.f32.xlu0 %v758
        %v778 = vpop.xlane.xlu0 %777
        %779 = vadd.xlane.f32.xlu0 %v759
        %v780 = vpop.xlane.xlu0 %779
        %781 = vadd.xlane.f32.xlu0 %v760
        %v782 = vpop.xlane.xlu0 %781
        %783 = vadd.xlane.f32.xlu0 %v761
        %v784 = vpop.xlane.xlu0 %783
        %785 = vadd.xlane.f32.xlu0 %v762
        %v786 = vpop.xlane.xlu0 %785
        %787 = vadd.xlane.f32.xlu0 %v763
        %v788 = vpop.xlane.xlu0 %787
        %789 = vadd.xlane.f32.xlu0 %v764
        %v790 = vpop.xlane.xlu0 %789
        %791 = vadd.xlane.f32.xlu0 %v765
        %v792 = vpop.xlane.xlu0 %791
        %793 = vadd.xlane.f32.xlu0 %v766
        %v794 = vpop.xlane.xlu0 %793
        %795 = vadd.xlane.f32.xlu0 %v767
        %v796 = vpop.xlane.xlu0 %795
        %797 = vadd.xlane.f32.xlu0 %v768
        %v798 = vpop.xlane.xlu0 %797
        %799 = vadd.xlane.f32.xlu0 %v769
        %v800 = vpop.xlane.xlu0 %799
        %801 = vadd.xlane.f32.xlu0 %v770
        %v802 = vpop.xlane.xlu0 %801
        %s803 = smul.u32 %s23, 2
        %s804 = scalar_lea.vmem [#allocation2], %s803
        %v805 = vld [vmem:[%s804] sm:$0x3]
        %v822 = vlaneseq
        %v823 = vand.u32 %v822, 127
        %v824 = vlaneseq
        %v825 = vshrl.u32 %v824, 7
        %v826 = vsub.s32 %v823, %v825
        %v827 = vrot.slane %v580, %v826
        %v828 = vadd.s32 %v823, 4294967288
        %v829 = vlaneseq
        %v830 = vshrl.u32 %v829, 7
        %v831 = vsub.s32 %v828, %v830
        %v832 = vrot.slane %v582, %v831
        %vm833 = vcmask 130112
        %v834 = vsel %vm833, %v832, %v827
        %v835 = vadd.s32 %v823, 4294967280
        %v836 = vlaneseq
        %v837 = vshrl.u32 %v836, 7
        %v838 = vsub.s32 %v835, %v837
        %v839 = vrot.slane %v584, %v838
        %vm840 = vcmask 195712
        %v841 = vsel %vm840, %v839, %v834
        %v842 = vadd.s32 %v823, 4294967272
        %v843 = vlaneseq
        %v844 = vshrl.u32 %v843, 7
        %v845 = vsub.s32 %v842, %v844
        %v846 = vrot.slane %v586, %v845
        %vm847 = vcmask 261312
        %v848 = vsel %vm847, %v846, %v841
        %v849 = vadd.s32 %v823, 4294967264
        %v850 = vlaneseq
        %v851 = vshrl.u32 %v850, 7
        %v852 = vsub.s32 %v849, %v851
        %v853 = vrot.slane %v588, %v852
        %vm854 = vcmask 326912
        %v855 = vsel %vm854, %v853, %v848
        %v856 = vadd.s32 %v823, 4294967256
        %v857 = vlaneseq
        %v858 = vshrl.u32 %v857, 7
        %v859 = vsub.s32 %v856, %v858
        %v860 = vrot.slane %v590, %v859
        %vm861 = vcmask 392512
        %v862 = vsel %vm861, %v860, %v855
        %v863 = vadd.s32 %v823, 4294967248
        %v864 = vlaneseq
        %v865 = vshrl.u32 %v864, 7
        %v866 = vsub.s32 %v863, %v865
        %v867 = vrot.slane %v592, %v866
        %vm868 = vcmask 458112
        %v869 = vsel %vm868, %v867, %v862
        %v870 = vadd.s32 %v823, 4294967240
        %v871 = vlaneseq
        %v872 = vshrl.u32 %v871, 7
        %v873 = vsub.s32 %v870, %v872
        %v874 = vrot.slane %v594, %v873
        %vm875 = vcmask 523712
        %v876 = vsel %vm875, %v874, %v869
        %v877 = vadd.s32 %v823, 4294967232
        %v878 = vlaneseq
        %v879 = vshrl.u32 %v878, 7
        %v880 = vsub.s32 %v877, %v879
        %v881 = vrot.slane %v596, %v880
        %vm882 = vcmask 589312
        %v883 = vsel %vm882, %v881, %v876
        %v884 = vadd.s32 %v823, 4294967224
        %v885 = vlaneseq
        %v886 = vshrl.u32 %v885, 7
        %v887 = vsub.s32 %v884, %v886
        %v888 = vrot.slane %v598, %v887
        %vm889 = vcmask 654912
        %v890 = vsel %vm889, %v888, %v883
        %v891 = vadd.s32 %v823, 4294967216
        %v892 = vlaneseq
        %v893 = vshrl.u32 %v892, 7
        %v894 = vsub.s32 %v891, %v893
        %v895 = vrot.slane %v600, %v894
        %vm896 = vcmask 720512
        %v897 = vsel %vm896, %v895, %v890
        %v898 = vadd.s32 %v823, 4294967208
        %v899 = vlaneseq
        %v900 = vshrl.u32 %v899, 7
        %v901 = vsub.s32 %v898, %v900
        %v902 = vrot.slane %v602, %v901
        %vm903 = vcmask 786112
        %v904 = vsel %vm903, %v902, %v897
        %v905 = vadd.s32 %v823, 4294967200
        %v906 = vlaneseq
        %v907 = vshrl.u32 %v906, 7
        %v908 = vsub.s32 %v905, %v907
        %v909 = vrot.slane %v604, %v908
        %vm910 = vcmask 851712
        %v911 = vsel %vm910, %v909, %v904
        %v912 = vadd.s32 %v823, 4294967192
        %v913 = vlaneseq
        %v914 = vshrl.u32 %v913, 7
        %v915 = vsub.s32 %v912, %v914
        %v916 = vrot.slane %v606, %v915
        %vm917 = vcmask 917312
        %v918 = vsel %vm917, %v916, %v911
        %v919 = vadd.s32 %v823, 4294967184
        %v920 = vlaneseq
        %v921 = vshrl.u32 %v920, 7
        %v922 = vsub.s32 %v919, %v921
        %v923 = vrot.slane %v608, %v922
        %vm924 = vcmask 982912
        %v925 = vsel %vm924, %v923, %v918
        %v926 = vadd.s32 %v823, 4294967176
        %v927 = vlaneseq
        %v928 = vshrl.u32 %v927, 7
        %v929 = vsub.s32 %v926, %v928
        %v930 = vrot.slane %v610, %v929
        %vm931 = vcmask 1048512
        %v932 = vsel %vm931, %v930, %v925
        %v950 = vlaneseq
        %v951 = vshrl.u32 %v950, 7
        %v952 = vsub.s32 %v823, %v951
        %v953 = vrot.slane %v772, %v952
        %v954 = vlaneseq
        %v955 = vshrl.u32 %v954, 7
        %v956 = vsub.s32 %v828, %v955
        %v957 = vrot.slane %v774, %v956
        %v958 = vsel %vm833, %v957, %v953
        %v959 = vlaneseq
        %v960 = vshrl.u32 %v959, 7
        %v961 = vsub.s32 %v835, %v960
        %v962 = vrot.slane %v776, %v961
        %v963 = vsel %vm840, %v962, %v958
        %v964 = vlaneseq
        %v965 = vshrl.u32 %v964, 7
        %v966 = vsub.s32 %v842, %v965
        %v967 = vrot.slane %v778, %v966
        %v968 = vsel %vm847, %v967, %v963
        %v969 = vlaneseq
        %v970 = vshrl.u32 %v969, 7
        %v971 = vsub.s32 %v849, %v970
        %v972 = vrot.slane %v780, %v971
        %v973 = vsel %vm854, %v972, %v968
        %v974 = vlaneseq
        %v975 = vshrl.u32 %v974, 7
        %v976 = vsub.s32 %v856, %v975
        %v977 = vrot.slane %v782, %v976
        %v978 = vsel %vm861, %v977, %v973
        %v979 = vlaneseq
        %v980 = vshrl.u32 %v979, 7
        %v981 = vsub.s32 %v863, %v980
        %v982 = vrot.slane %v784, %v981
        %v983 = vsel %vm868, %v982, %v978
        %v984 = vlaneseq
        %v985 = vshrl.u32 %v984, 7
        %v986 = vsub.s32 %v870, %v985
        %v987 = vrot.slane %v786, %v986
        %v988 = vsel %vm875, %v987, %v983
        %v989 = vlaneseq
        %v990 = vshrl.u32 %v989, 7
        %v991 = vsub.s32 %v877, %v990
        %v992 = vrot.slane %v788, %v991
        %v993 = vsel %vm882, %v992, %v988
        %v994 = vlaneseq
        %v995 = vshrl.u32 %v994, 7
        %v996 = vsub.s32 %v884, %v995
        %v997 = vrot.slane %v790, %v996
        %v998 = vsel %vm889, %v997, %v993
        %v999 = vlaneseq
        %v1000 = vshrl.u32 %v999, 7
        %v1001 = vsub.s32 %v891, %v1000
        %v1002 = vrot.slane %v792, %v1001
        %v1003 = vsel %vm896, %v1002, %v998
        %v1004 = vlaneseq
        %v1005 = vshrl.u32 %v1004, 7
        %v1006 = vsub.s32 %v898, %v1005
        %v1007 = vrot.slane %v794, %v1006
        %v1008 = vsel %vm903, %v1007, %v1003
        %v1009 = vlaneseq
        %v1010 = vshrl.u32 %v1009, 7
        %v1011 = vsub.s32 %v905, %v1010
        %v1012 = vrot.slane %v796, %v1011
        %v1013 = vsel %vm910, %v1012, %v1008
        %v1014 = vlaneseq
        %v1015 = vshrl.u32 %v1014, 7
        %v1016 = vsub.s32 %v912, %v1015
        %v1017 = vrot.slane %v798, %v1016
        %v1018 = vsel %vm917, %v1017, %v1013
        %v1019 = vlaneseq
        %v1020 = vshrl.u32 %v1019, 7
        %v1021 = vsub.s32 %v919, %v1020
        %v1022 = vrot.slane %v800, %v1021
        %v1023 = vsel %vm924, %v1022, %v1018
        %v1024 = vlaneseq
        %v1025 = vshrl.u32 %v1024, 7
        %v1026 = vsub.s32 %v926, %v1025
        %v1027 = vrot.slane %v802, %v1026
        %v1028 = vsel %vm931, %v1027, %v1023
        %vm1030 = vcmask 1040384
        %v1031 = vsel %vm1030, %v932, %v1028
        %v1032 = vadd.f32 %v805, %v1031
        %1033 = vst [vmem:[%s804] sm:$0x3] %v1032
        %p1034 = scmp.eq.s32.totalorder %s23, 2
        %p1035 = scmp.eq.s32.totalorder %s24, 1
        %p1036 = pnand %p1034, %p1035
        %p1037 = pneg %p1036
        // Predicated region
        $region94: #{_lambda_.1} parent=84 // pred_check
          _
        $region95: #{_lambda_.1} parent=84 // pred_check_branch
          %1039 = sbr.rel (%p1036) target = $region97
        $region96: #{_lambda_.1} parent=84 // pred_region
          %v1040 = vld [vmem:[#allocation2] sm:$0x3]
          %s1041 = scalar_lea.vmem [#allocation2], 2
          %v1042 = vld [vmem:[%s1041] sm:$0x3]
          %s1043 = scalar_lea.vmem [#allocation2], 4
          %v1044 = vld [vmem:[%s1043] sm:$0x3]
          %v1046 = vrot.slane %v1042, 6
          %v1049 = vrot.slane %v1044, 4
          %vm1051 = vcmask 1041408
          %v1052 = vsel %vm1051, %v1040, %v1046
          %vm1053 = vcmask 1043456
          %v1054 = vsel %vm1053, %v1052, %v1049
          %v1055 = vmul.f32 %v1054, 0.00390625
          %v1056 = vpack.c.bf16 %v1055, %v1055
          %v1057 = vld [vmem:[%s3] sm:$0xff]
          %v1058 = vld [vmem:[%s3 + $0x8] sm:$0xff]
          %v1059 = vld [vmem:[%s3 + $0x10] sm:$0xff]
          %v1060 = vld [vmem:[%s3 + $0x18] sm:$0xff]
          %v1061 = vld [vmem:[%s3 + $0x20] sm:$0xff]
          %v1062 = vld [vmem:[%s3 + $0x28] sm:$0xff]
          %v1063 = vld [vmem:[%s3 + $0x30] sm:$0xff]
          %v1064 = vld [vmem:[%s3 + $0x38] sm:$0xff]
          %v1065 = vld [vmem:[%s3 + $0x40] sm:$0xff]
          %v1066 = vld [vmem:[%s3 + $0x48] sm:$0xff]
          %v1067 = vld [vmem:[%s3 + $0x50] sm:$0xff]
          %v1068 = vld [vmem:[%s3 + $0x58] sm:$0xff]
          %v1069 = vld [vmem:[%s3 + $0x60] sm:$0xff]
          %v1070 = vld [vmem:[%s3 + $0x68] sm:$0xff]
          %v1071 = vld [vmem:[%s3 + $0x70] sm:$0xff]
          %v1072 = vld [vmem:[%s3 + $0x78] sm:$0xff]
          %v1073 = vld [vmem:[%s3 + $0x80] sm:$0xff]
          %v1074 = vld [vmem:[%s3 + $0x88] sm:$0xff]
          %v1075 = vld [vmem:[%s3 + $0x90] sm:$0xff]
          %v1076 = vld [vmem:[%s3 + $0x98] sm:$0xff]
          %v1077 = vld [vmem:[%s3 + $0xa0] sm:$0xff]
          %v1078 = vld [vmem:[%s3 + $0xa8] sm:$0xff]
          %v1079 = vld [vmem:[%s3 + $0xb0] sm:$0xff]
          %v1080 = vld [vmem:[%s3 + $0xb8] sm:$0xff]
          %v1081 = vld [vmem:[%s3 + $0xc0] sm:$0xff]
          %v1082 = vld [vmem:[%s3 + $0xc8] sm:$0xff]
          %v1083 = vld [vmem:[%s3 + $0xd0] sm:$0xff]
          %v1084 = vld [vmem:[%s3 + $0xd8] sm:$0xff]
          %v1085 = vld [vmem:[%s3 + $0xe0] sm:$0xff]
          %v1086 = vld [vmem:[%s3 + $0xe8] sm:$0xff]
          %v1087 = vld [vmem:[%s3 + $0xf0] sm:$0xff]
          %v1088 = vld [vmem:[%s3 + $0xf8] sm:$0xff]
          %v1089 = vld [vmem:[%s3 + $0x100] sm:$0xff]
          %v1090 = vld [vmem:[%s3 + $0x108] sm:$0xff]
          %v1091 = vld [vmem:[%s3 + $0x110] sm:$0xff]
          %v1092 = vld [vmem:[%s3 + $0x118] sm:$0xff]
          %v1093 = vld [vmem:[%s3 + $0x120] sm:$0xff]
          %v1094 = vld [vmem:[%s3 + $0x128] sm:$0xff]
          %v1095 = vld [vmem:[%s3 + $0x130] sm:$0xff]
          %v1096 = vld [vmem:[%s3 + $0x138] sm:$0xff]
          %v1097 = vld [vmem:[%s3 + $0x140] sm:$0xff]
          %v1098 = vld [vmem:[%s3 + $0x148] sm:$0xff]
          %v1099 = vld [vmem:[%s3 + $0x150] sm:$0xff]
          %v1100 = vld [vmem:[%s3 + $0x158] sm:$0xff]
          %v1101 = vld [vmem:[%s3 + $0x160] sm:$0xff]
          %v1102 = vld [vmem:[%s3 + $0x168] sm:$0xff]
          %v1103 = vld [vmem:[%s3 + $0x170] sm:$0xff]
          %v1104 = vld [vmem:[%s3 + $0x178] sm:$0xff]
          %v1105 = vld [vmem:[%s3 + $0x180] sm:$0xff]
          %v1106 = vld [vmem:[%s3 + $0x188] sm:$0xff]
          %v1107 = vld [vmem:[%s3 + $0x190] sm:$0xff]
          %v1108 = vld [vmem:[%s3 + $0x198] sm:$0xff]
          %v1109 = vld [vmem:[%s3 + $0x1a0] sm:$0xff]
          %v1110 = vld [vmem:[%s3 + $0x1a8] sm:$0xff]
          %v1111 = vld [vmem:[%s3 + $0x1b0] sm:$0xff]
          %v1112 = vld [vmem:[%s3 + $0x1b8] sm:$0xff]
          %v1113 = vld [vmem:[%s3 + $0x1c0] sm:$0xff]
          %v1114 = vld [vmem:[%s3 + $0x1c8] sm:$0xff]
          %v1115 = vld [vmem:[%s3 + $0x1d0] sm:$0xff]
          %v1116 = vld [vmem:[%s3 + $0x1d8] sm:$0xff]
          %v1117 = vld [vmem:[%s3 + $0x1e0] sm:$0xff]
          %v1118 = vld [vmem:[%s3 + $0x1e8] sm:$0xff]
          %v1119 = vld [vmem:[%s3 + $0x1f0] sm:$0xff]
          %v1120 = vld [vmem:[%s3 + $0x1f8] sm:$0xff]
          %v1185 = vunpack.c.l.b16 %v1057
          %v1186 = vunpack.c.h.b16 %v1057
          %v1187 = vunpack.c.l.b16 %v1058
          %v1188 = vunpack.c.h.b16 %v1058
          %v1189 = vunpack.c.l.b16 %v1059
          %v1190 = vunpack.c.h.b16 %v1059
          %v1191 = vunpack.c.l.b16 %v1060
          %v1192 = vunpack.c.h.b16 %v1060
          %v1193 = vunpack.c.l.b16 %v1061
          %v1194 = vunpack.c.h.b16 %v1061
          %v1195 = vunpack.c.l.b16 %v1062
          %v1196 = vunpack.c.h.b16 %v1062
          %v1197 = vunpack.c.l.b16 %v1063
          %v1198 = vunpack.c.h.b16 %v1063
          %v1199 = vunpack.c.l.b16 %v1064
          %v1200 = vunpack.c.h.b16 %v1064
          %v1201 = vunpack.c.l.b16 %v1065
          %v1202 = vunpack.c.h.b16 %v1065
          %v1203 = vunpack.c.l.b16 %v1066
          %v1204 = vunpack.c.h.b16 %v1066
          %v1205 = vunpack.c.l.b16 %v1067
          %v1206 = vunpack.c.h.b16 %v1067
          %v1207 = vunpack.c.l.b16 %v1068
          %v1208 = vunpack.c.h.b16 %v1068
          %v1209 = vunpack.c.l.b16 %v1069
          %v1210 = vunpack.c.h.b16 %v1069
          %v1211 = vunpack.c.l.b16 %v1070
          %v1212 = vunpack.c.h.b16 %v1070
          %v1213 = vunpack.c.l.b16 %v1071
          %v1214 = vunpack.c.h.b16 %v1071
          %v1215 = vunpack.c.l.b16 %v1072
          %v1216 = vunpack.c.h.b16 %v1072
          %v1217 = vunpack.c.l.b16 %v1073
          %v1218 = vunpack.c.h.b16 %v1073
          %v1219 = vunpack.c.l.b16 %v1074
          %v1220 = vunpack.c.h.b16 %v1074
          %v1221 = vunpack.c.l.b16 %v1075
          %v1222 = vunpack.c.h.b16 %v1075
          %v1223 = vunpack.c.l.b16 %v1076
          %v1224 = vunpack.c.h.b16 %v1076
          %v1225 = vunpack.c.l.b16 %v1077
          %v1226 = vunpack.c.h.b16 %v1077
          %v1227 = vunpack.c.l.b16 %v1078
          %v1228 = vunpack.c.h.b16 %v1078
          %v1229 = vunpack.c.l.b16 %v1079
          %v1230 = vunpack.c.h.b16 %v1079
          %v1231 = vunpack.c.l.b16 %v1080
          %v1232 = vunpack.c.h.b16 %v1080
          %v1233 = vunpack.c.l.b16 %v1081
          %v1234 = vunpack.c.h.b16 %v1081
          %v1235 = vunpack.c.l.b16 %v1082
          %v1236 = vunpack.c.h.b16 %v1082
          %v1237 = vunpack.c.l.b16 %v1083
          %v1238 = vunpack.c.h.b16 %v1083
          %v1239 = vunpack.c.l.b16 %v1084
          %v1240 = vunpack.c.h.b16 %v1084
          %v1241 = vunpack.c.l.b16 %v1085
          %v1242 = vunpack.c.h.b16 %v1085
          %v1243 = vunpack.c.l.b16 %v1086
          %v1244 = vunpack.c.h.b16 %v1086
          %v1245 = vunpack.c.l.b16 %v1087
          %v1246 = vunpack.c.h.b16 %v1087
          %v1247 = vunpack.c.l.b16 %v1088
          %v1248 = vunpack.c.h.b16 %v1088
          %v1249 = vunpack.c.l.b16 %v1089
          %v1250 = vunpack.c.h.b16 %v1089
          %v1251 = vunpack.c.l.b16 %v1090
          %v1252 = vunpack.c.h.b16 %v1090
          %v1253 = vunpack.c.l.b16 %v1091
          %v1254 = vunpack.c.h.b16 %v1091
          %v1255 = vunpack.c.l.b16 %v1092
          %v1256 = vunpack.c.h.b16 %v1092
          %v1257 = vunpack.c.l.b16 %v1093
          %v1258 = vunpack.c.h.b16 %v1093
          %v1259 = vunpack.c.l.b16 %v1094
          %v1260 = vunpack.c.h.b16 %v1094
          %v1261 = vunpack.c.l.b16 %v1095
          %v1262 = vunpack.c.h.b16 %v1095
          %v1263 = vunpack.c.l.b16 %v1096
          %v1264 = vunpack.c.h.b16 %v1096
          %v1265 = vunpack.c.l.b16 %v1097
          %v1266 = vunpack.c.h.b16 %v1097
          %v1267 = vunpack.c.l.b16 %v1098
          %v1268 = vunpack.c.h.b16 %v1098
          %v1269 = vunpack.c.l.b16 %v1099
          %v1270 = vunpack.c.h.b16 %v1099
          %v1271 = vunpack.c.l.b16 %v1100
          %v1272 = vunpack.c.h.b16 %v1100
          %v1273 = vunpack.c.l.b16 %v1101
          %v1274 = vunpack.c.h.b16 %v1101
          %v1275 = vunpack.c.l.b16 %v1102
          %v1276 = vunpack.c.h.b16 %v1102
          %v1277 = vunpack.c.l.b16 %v1103
          %v1278 = vunpack.c.h.b16 %v1103
          %v1279 = vunpack.c.l.b16 %v1104
          %v1280 = vunpack.c.h.b16 %v1104
          %v1281 = vunpack.c.l.b16 %v1105
          %v1282 = vunpack.c.h.b16 %v1105
          %v1283 = vunpack.c.l.b16 %v1106
          %v1284 = vunpack.c.h.b16 %v1106
          %v1285 = vunpack.c.l.b16 %v1107
          %v1286 = vunpack.c.h.b16 %v1107
          %v1287 = vunpack.c.l.b16 %v1108
          %v1288 = vunpack.c.h.b16 %v1108
          %v1289 = vunpack.c.l.b16 %v1109
          %v1290 = vunpack.c.h.b16 %v1109
          %v1291 = vunpack.c.l.b16 %v1110
          %v1292 = vunpack.c.h.b16 %v1110
          %v1293 = vunpack.c.l.b16 %v1111
          %v1294 = vunpack.c.h.b16 %v1111
          %v1295 = vunpack.c.l.b16 %v1112
          %v1296 = vunpack.c.h.b16 %v1112
          %v1297 = vunpack.c.l.b16 %v1113
          %v1298 = vunpack.c.h.b16 %v1113
          %v1299 = vunpack.c.l.b16 %v1114
          %v1300 = vunpack.c.h.b16 %v1114
          %v1301 = vunpack.c.l.b16 %v1115
          %v1302 = vunpack.c.h.b16 %v1115
          %v1303 = vunpack.c.l.b16 %v1116
          %v1304 = vunpack.c.h.b16 %v1116
          %v1305 = vunpack.c.l.b16 %v1117
          %v1306 = vunpack.c.h.b16 %v1117
          %v1307 = vunpack.c.l.b16 %v1118
          %v1308 = vunpack.c.h.b16 %v1118
          %v1309 = vunpack.c.l.b16 %v1119
          %v1310 = vunpack.c.h.b16 %v1119
          %v1311 = vunpack.c.l.b16 %v1120
          %v1312 = vunpack.c.h.b16 %v1120
          %v1313 = vpack.c.b16 %v1193, %v1185
          %v1314 = vpack.c.b16 %v1194, %v1186
          %v1315 = vpack.c.b16 %v1195, %v1187
          %v1316 = vpack.c.b16 %v1196, %v1188
          %v1317 = vpack.c.b16 %v1197, %v1189
          %v1318 = vpack.c.b16 %v1198, %v1190
          %v1319 = vpack.c.b16 %v1199, %v1191
          %v1320 = vpack.c.b16 %v1200, %v1192
          %v1321 = vpack.c.b16 %v1209, %v1201
          %v1322 = vpack.c.b16 %v1210, %v1202
          %v1323 = vpack.c.b16 %v1211, %v1203
          %v1324 = vpack.c.b16 %v1212, %v1204
          %v1325 = vpack.c.b16 %v1213, %v1205
          %v1326 = vpack.c.b16 %v1214, %v1206
          %v1327 = vpack.c.b16 %v1215, %v1207
          %v1328 = vpack.c.b16 %v1216, %v1208
          %v1329 = vpack.c.b16 %v1225, %v1217
          %v1330 = vpack.c.b16 %v1226, %v1218
          %v1331 = vpack.c.b16 %v1227, %v1219
          %v1332 = vpack.c.b16 %v1228, %v1220
          %v1333 = vpack.c.b16 %v1229, %v1221
          %v1334 = vpack.c.b16 %v1230, %v1222
          %v1335 = vpack.c.b16 %v1231, %v1223
          %v1336 = vpack.c.b16 %v1232, %v1224
          %v1337 = vpack.c.b16 %v1241, %v1233
          %v1338 = vpack.c.b16 %v1242, %v1234
          %v1339 = vpack.c.b16 %v1243, %v1235
          %v1340 = vpack.c.b16 %v1244, %v1236
          %v1341 = vpack.c.b16 %v1245, %v1237
          %v1342 = vpack.c.b16 %v1246, %v1238
          %v1343 = vpack.c.b16 %v1247, %v1239
          %v1344 = vpack.c.b16 %v1248, %v1240
          %v1345 = vpack.c.b16 %v1257, %v1249
          %v1346 = vpack.c.b16 %v1258, %v1250
          %v1347 = vpack.c.b16 %v1259, %v1251
          %v1348 = vpack.c.b16 %v1260, %v1252
          %v1349 = vpack.c.b16 %v1261, %v1253
          %v1350 = vpack.c.b16 %v1262, %v1254
          %v1351 = vpack.c.b16 %v1263, %v1255
          %v1352 = vpack.c.b16 %v1264, %v1256
          %v1353 = vpack.c.b16 %v1273, %v1265
          %v1354 = vpack.c.b16 %v1274, %v1266
          %v1355 = vpack.c.b16 %v1275, %v1267
          %v1356 = vpack.c.b16 %v1276, %v1268
          %v1357 = vpack.c.b16 %v1277, %v1269
          %v1358 = vpack.c.b16 %v1278, %v1270
          %v1359 = vpack.c.b16 %v1279, %v1271
          %v1360 = vpack.c.b16 %v1280, %v1272
          %v1361 = vpack.c.b16 %v1289, %v1281
          %v1362 = vpack.c.b16 %v1290, %v1282
          %v1363 = vpack.c.b16 %v1291, %v1283
          %v1364 = vpack.c.b16 %v1292, %v1284
          %v1365 = vpack.c.b16 %v1293, %v1285
          %v1366 = vpack.c.b16 %v1294, %v1286
          %v1367 = vpack.c.b16 %v1295, %v1287
          %v1368 = vpack.c.b16 %v1296, %v1288
          %v1369 = vpack.c.b16 %v1305, %v1297
          %v1370 = vpack.c.b16 %v1306, %v1298
          %v1371 = vpack.c.b16 %v1307, %v1299
          %v1372 = vpack.c.b16 %v1308, %v1300
          %v1373 = vpack.c.b16 %v1309, %v1301
          %v1374 = vpack.c.b16 %v1310, %v1302
          %v1375 = vpack.c.b16 %v1311, %v1303
          %v1376 = vpack.c.b16 %v1312, %v1304
          %1441 = vmatprep.subr.bf16.mxu0 %v1314
          %1442 = vmatpush1.bf16.msra.mxu0 %v1313
          %1443 = vmatprep.subr.bf16.mxu0 %v1322
          %1444 = vmatpush1.bf16.msra.mxu0 %v1321
          %1445 = vmatprep.subr.bf16.mxu0 %v1330
          %1446 = vmatpush1.bf16.msra.mxu0 %v1329
          %1447 = vmatprep.subr.bf16.mxu0 %v1338
          %1448 = vmatpush1.bf16.msra.mxu0 %v1337
          %1449 = vmatprep.subr.bf16.mxu0 %v1346
          %1450 = vmatpush1.bf16.msra.mxu0 %v1345
          %1451 = vmatprep.subr.bf16.mxu0 %v1354
          %1452 = vmatpush1.bf16.msra.mxu0 %v1353
          %1453 = vmatprep.subr.bf16.mxu0 %v1362
          %1454 = vmatpush1.bf16.msra.mxu0 %v1361
          %1455 = vmatprep.subr.bf16.mxu0 %v1370
          %1456 = vmatpush1.bf16.msra.mxu0 %v1369
          %1457 = vmatprep.subr.bf16.mxu0 0
          %1458 = vmatpush1.bf16.msra.mxu0 0
          %1459 = vmatprep.subr.bf16.mxu0 0
          %1460 = vmatpush1.bf16.msra.mxu0 0
          %1461 = vmatprep.subr.bf16.mxu0 0
          %1462 = vmatpush1.bf16.msra.mxu0 0
          %1463 = vmatprep.subr.bf16.mxu0 0
          %1464 = vmatpush1.bf16.msra.mxu0 0
          %1465 = vmatprep.subr.bf16.mxu0 0
          %1466 = vmatpush1.bf16.msra.mxu0 0
          %1467 = vmatprep.subr.bf16.mxu0 0
          %1468 = vmatpush1.bf16.msra.mxu0 0
          %1469 = vmatprep.subr.bf16.mxu0 0
          %1470 = vmatpush1.bf16.msra.mxu0 0
          %1471 = vmatprep.subr.bf16.mxu0 0
          %1472 = vmatpush1.bf16.msra.mxu0 0
          %1473 = vmatprep.mubr.bf16.mxu0 0
          %1474 = vmatmul.mubr.bf16.gmra.mrb[0].mxu0 %v1056
          %v1475 = vpop.f32.mrb[0].mxu0
          %v1476 = vadd.f32 0.0, %v1475
          %v1477 = vpop.f32.mrb[0].mxu0
          %v1478 = vadd.f32 0.0, %v1477
          %v1479 = vpop.f32.mrb[0].mxu0
          %v1480 = vpop.f32.mrb[0].mxu0
          %1481 = vdwg.mxu0
          %1482 = vmatprep.subr.bf16.mxu0 %v1316
          %1483 = vmatpush1.bf16.msra.mxu0 %v1315
          %1484 = vmatprep.subr.bf16.mxu0 %v1324
          %1485 = vmatpush1.bf16.msra.mxu0 %v1323
          %1486 = vmatprep.subr.bf16.mxu0 %v1332
          %1487 = vmatpush1.bf16.msra.mxu0 %v1331
          %1488 = vmatprep.subr.bf16.mxu0 %v1340
          %1489 = vmatpush1.bf16.msra.mxu0 %v1339
          %1490 = vmatprep.subr.bf16.mxu0 %v1348
          %1491 = vmatpush1.bf16.msra.mxu0 %v1347
          %1492 = vmatprep.subr.bf16.mxu0 %v1356
          %1493 = vmatpush1.bf16.msra.mxu0 %v1355
          %1494 = vmatprep.subr.bf16.mxu0 %v1364
          %1495 = vmatpush1.bf16.msra.mxu0 %v1363
          %1496 = vmatprep.subr.bf16.mxu0 %v1372
          %1497 = vmatpush1.bf16.msra.mxu0 %v1371
          %1498 = vmatprep.subr.bf16.mxu0 0
          %1499 = vmatpush1.bf16.msra.mxu0 0
          %1500 = vmatprep.subr.bf16.mxu0 0
          %1501 = vmatpush1.bf16.msra.mxu0 0
          %1502 = vmatprep.subr.bf16.mxu0 0
          %1503 = vmatpush1.bf16.msra.mxu0 0
          %1504 = vmatprep.subr.bf16.mxu0 0
          %1505 = vmatpush1.bf16.msra.mxu0 0
          %1506 = vmatprep.subr.bf16.mxu0 0
          %1507 = vmatpush1.bf16.msra.mxu0 0
          %1508 = vmatprep.subr.bf16.mxu0 0
          %1509 = vmatpush1.bf16.msra.mxu0 0
          %1510 = vmatprep.subr.bf16.mxu0 0
          %1511 = vmatpush1.bf16.msra.mxu0 0
          %1512 = vmatprep.subr.bf16.mxu0 0
          %1513 = vmatpush1.bf16.msra.mxu0 0
          %1514 = vmatprep.mubr.bf16.mxu0 0
          %1515 = vmatmul.mubr.bf16.gmra.mrb[0].mxu0 %v1056
          %v1516 = vpop.f32.mrb[0].mxu0
          %v1517 = vadd.f32 0.0, %v1516
          %v1518 = vpop.f32.mrb[0].mxu0
          %v1519 = vadd.f32 0.0, %v1518
          %v1520 = vpop.f32.mrb[0].mxu0
          %v1521 = vpop.f32.mrb[0].mxu0
          %1522 = vdwg.mxu0
          %1523 = vmatprep.subr.bf16.mxu0 %v1318
          %1524 = vmatpush1.bf16.msra.mxu0 %v1317
          %1525 = vmatprep.subr.bf16.mxu0 %v1326
          %1526 = vmatpush1.bf16.msra.mxu0 %v1325
          %1527 = vmatprep.subr.bf16.mxu0 %v1334
          %1528 = vmatpush1.bf16.msra.mxu0 %v1333
          %1529 = vmatprep.subr.bf16.mxu0 %v1342
          %1530 = vmatpush1.bf16.msra.mxu0 %v1341
          %1531 = vmatprep.subr.bf16.mxu0 %v1350
          %1532 = vmatpush1.bf16.msra.mxu0 %v1349
          %1533 = vmatprep.subr.bf16.mxu0 %v1358
          %1534 = vmatpush1.bf16.msra.mxu0 %v1357
          %1535 = vmatprep.subr.bf16.mxu0 %v1366
          %1536 = vmatpush1.bf16.msra.mxu0 %v1365
          %1537 = vmatprep.subr.bf16.mxu0 %v1374
          %1538 = vmatpush1.bf16.msra.mxu0 %v1373
          %1539 = vmatprep.subr.bf16.mxu0 0
          %1540 = vmatpush1.bf16.msra.mxu0 0
          %1541 = vmatprep.subr.bf16.mxu0 0
          %1542 = vmatpush1.bf16.msra.mxu0 0
          %1543 = vmatprep.subr.bf16.mxu0 0
          %1544 = vmatpush1.bf16.msra.mxu0 0
          %1545 = vmatprep.subr.bf16.mxu0 0
          %1546 = vmatpush1.bf16.msra.mxu0 0
          %1547 = vmatprep.subr.bf16.mxu0 0
          %1548 = vmatpush1.bf16.msra.mxu0 0
          %1549 = vmatprep.subr.bf16.mxu0 0
          %1550 = vmatpush1.bf16.msra.mxu0 0
          %1551 = vmatprep.subr.bf16.mxu0 0
          %1552 = vmatpush1.bf16.msra.mxu0 0
          %1553 = vmatprep.subr.bf16.mxu0 0
          %1554 = vmatpush1.bf16.msra.mxu0 0
          %1555 = vmatprep.mubr.bf16.mxu0 0
          %1556 = vmatmul.mubr.bf16.gmra.mrb[0].mxu0 %v1056
          %v1557 = vpop.f32.mrb[0].mxu0
          %v1558 = vadd.f32 0.0, %v1557
          %v1559 = vpop.f32.mrb[0].mxu0
          %v1560 = vadd.f32 0.0, %v1559
          %v1561 = vpop.f32.mrb[0].mxu0
          %v1562 = vpop.f32.mrb[0].mxu0
          %1563 = vdwg.mxu0
          %1564 = vmatprep.subr.bf16.mxu0 %v1320
          %1565 = vmatpush1.bf16.msra.mxu0 %v1319
          %1566 = vmatprep.subr.bf16.mxu0 %v1328
          %1567 = vmatpush1.bf16.msra.mxu0 %v1327
          %1568 = vmatprep.subr.bf16.mxu0 %v1336
          %1569 = vmatpush1.bf16.msra.mxu0 %v1335
          %1570 = vmatprep.subr.bf16.mxu0 %v1344
          %1571 = vmatpush1.bf16.msra.mxu0 %v1343
          %1572 = vmatprep.subr.bf16.mxu0 %v1352
          %1573 = vmatpush1.bf16.msra.mxu0 %v1351
          %1574 = vmatprep.subr.bf16.mxu0 %v1360
          %1575 = vmatpush1.bf16.msra.mxu0 %v1359
          %1576 = vmatprep.subr.bf16.mxu0 %v1368
          %1577 = vmatpush1.bf16.msra.mxu0 %v1367
          %1578 = vmatprep.subr.bf16.mxu0 %v1376
          %1579 = vmatpush1.bf16.msra.mxu0 %v1375
          %1580 = vmatprep.subr.bf16.mxu0 0
          %1581 = vmatpush1.bf16.msra.mxu0 0
          %1582 = vmatprep.subr.bf16.mxu0 0
          %1583 = vmatpush1.bf16.msra.mxu0 0
          %1584 = vmatprep.subr.bf16.mxu0 0
          %1585 = vmatpush1.bf16.msra.mxu0 0
          %1586 = vmatprep.subr.bf16.mxu0 0
          %1587 = vmatpush1.bf16.msra.mxu0 0
          %1588 = vmatprep.subr.bf16.mxu0 0
          %1589 = vmatpush1.bf16.msra.mxu0 0
          %1590 = vmatprep.subr.bf16.mxu0 0
          %1591 = vmatpush1.bf16.msra.mxu0 0
          %1592 = vmatprep.subr.bf16.mxu0 0
          %1593 = vmatpush1.bf16.msra.mxu0 0
          %1594 = vmatprep.subr.bf16.mxu0 0
          %1595 = vmatpush1.bf16.msra.mxu0 0
          %1596 = vmatprep.mubr.bf16.mxu0 0
          %1597 = vmatmul.mubr.bf16.gmra.mrb[0].mxu0 %v1056
          %v1598 = vpop.f32.mrb[0].mxu0
          %v1599 = vadd.f32 0.0, %v1598
          %v1600 = vpop.f32.mrb[0].mxu0
          %v1601 = vadd.f32 0.0, %v1600
          %v1602 = vpop.f32.mrb[0].mxu0
          %v1603 = vpop.f32.mrb[0].mxu0
          %1604 = vdwg.mxu0
          %v1609 = vrot.slane %v1558, 2
          %v1610 = vrot.slane %v1560, 2
          %v1611 = vrot.slane %v1599, 2
          %v1612 = vrot.slane %v1601, 2
          %v1617 = vadd.f32 %v1476, %v1609
          %v1618 = vadd.f32 %v1478, %v1610
          %v1619 = vadd.f32 %v1517, %v1611
          %v1620 = vadd.f32 %v1519, %v1612
          %v1621 = vld [vmem:[%s4] sm:$0xf]
          %v1623 = vlaneseq
          %v1624 = vshrl.u32 %v1623, 7
          %v1625 = vsub.s32 0, %v1624
          %v1626 = vrot.slane %v1621, %v1625
          %v1627 = vlaneseq
          %v1628 = vshrl.u32 %v1627, 7
          %v1629 = vsub.s32 1, %v1628
          %v1630 = vrot.slane %v1621, %v1629
          %v1631 = vlaneseq
          %v1632 = vshrl.u32 %v1631, 7
          %v1633 = vsub.s32 2, %v1632
          %v1634 = vrot.slane %v1621, %v1633
          %v1635 = vlaneseq
          %v1636 = vshrl.u32 %v1635, 7
          %v1637 = vsub.s32 3, %v1636
          %v1638 = vrot.slane %v1621, %v1637
          %v1643 = vadd.f32 %v1617, %v1626
          %v1644 = vadd.f32 %v1618, %v1630
          %v1645 = vadd.f32 %v1619, %v1634
          %v1646 = vadd.f32 %v1620, %v1638
          %v1647 = vmax.f32 %v1643, 0.0
          %v1648 = vmax.f32 %v1644, 0.0
          %v1649 = vmax.f32 %v1645, 0.0
          %v1650 = vmax.f32 %v1646, 0.0
          %v1651 = vpack.c.bf16 %v1647, %v1647
          %v1652 = vpack.c.bf16 %v1648, %v1648
          %v1653 = vpack.c.bf16 %v1649, %v1649
          %v1654 = vpack.c.bf16 %v1650, %v1650
          %v1655 = vld [vmem:[%s5] sm:$0x77]
          %v1656 = vld [vmem:[%s5 + $0x8] sm:$0x77]
          %v1657 = vrot.slane %v1558, 4
          %v1658 = vrot.slane %v1560, 4
          %v1659 = vrot.slane %v1599, 4
          %v1660 = vrot.slane %v1601, 4
          %v1665 = vadd.f32 %v1476, %v1657
          %v1666 = vadd.f32 %v1478, %v1658
          %v1667 = vadd.f32 %v1517, %v1659
          %v1668 = vadd.f32 %v1519, %v1660
          %v1669 = vadd.f32 %v1665, %v1626
          %v1670 = vadd.f32 %v1666, %v1630
          %v1671 = vadd.f32 %v1667, %v1634
          %v1672 = vadd.f32 %v1668, %v1638
          %v1673 = vmax.f32 %v1669, 0.0
          %v1674 = vmax.f32 %v1670, 0.0
          %v1675 = vmax.f32 %v1671, 0.0
          %v1676 = vmax.f32 %v1672, 0.0
          %v1677 = vpack.c.bf16 %v1673, %v1673
          %v1678 = vpack.c.bf16 %v1674, %v1674
          %v1679 = vpack.c.bf16 %v1675, %v1675
          %v1680 = vpack.c.bf16 %v1676, %v1676
          %s1681 = scalar_lea.vmem %s5, 16
          %v1682 = vld [vmem:[%s1681] sm:$0x77]
          %v1683 = vld [vmem:[%s1681 + $0x8] sm:$0x77]
          %v1686 = vunpack.c.l.b16 %v1682
          %v1687 = vunpack.c.h.b16 %v1682
          %v1688 = vunpack.c.l.b16 %v1683
          %v1689 = vunpack.c.h.b16 %v1683
          %v1690 = vpack.c.b16 %v1686, %v1686
          %v1691 = vpack.c.b16 %v1687, %v1687
          %v1692 = vpack.c.b16 %v1688, %v1688
          %v1693 = vpack.c.b16 %v1689, %v1689
          %1698 = vmatprep.subr.bf16.mxu0 %v1691
          %1699 = vmatpush1.bf16.xpose.msra.mxu0 %v1690
          %1700 = vmatprep.subr.bf16.mxu0 0
          %1701 = vmatpush1.bf16.xpose.msra.mxu0 0
          %1702 = vmatprep.subr.bf16.mxu0 0
          %1703 = vmatpush1.bf16.xpose.msra.mxu0 0
          %1704 = vmatprep.subr.bf16.mxu0 0
          %1705 = vmatpush1.bf16.xpose.msra.mxu0 0
          %1706 = vmatprep.subr.bf16.mxu0 0
          %1707 = vmatpush1.bf16.xpose.msra.mxu0 0
          %1708 = vmatprep.subr.bf16.mxu0 0
          %1709 = vmatpush1.bf16.xpose.msra.mxu0 0
          %1710 = vmatprep.subr.bf16.mxu0 0
          %1711 = vmatpush1.bf16.xpose.msra.mxu0 0
          %1712 = vmatprep.subr.bf16.mxu0 0
          %1713 = vmatpush1.bf16.xpose.msra.mxu0 0
          %1714 = vmatprep.subr.bf16.mxu0 0
          %1715 = vmatpush1.bf16.xpose.msra.mxu0 0
          %1716 = vmatprep.subr.bf16.mxu0 0
          %1717 = vmatpush1.bf16.xpose.msra.mxu0 0
          %1718 = vmatprep.subr.bf16.mxu0 0
          %1719 = vmatpush1.bf16.xpose.msra.mxu0 0
          %1720 = vmatprep.subr.bf16.mxu0 0
          %1721 = vmatpush1.bf16.xpose.msra.mxu0 0
          %1722 = vmatprep.subr.bf16.mxu0 0
          %1723 = vmatpush1.bf16.xpose.msra.mxu0 0
          %1724 = vmatprep.subr.bf16.mxu0 0
          %1725 = vmatpush1.bf16.xpose.msra.mxu0 0
          %1726 = vmatprep.subr.bf16.mxu0 0
          %1727 = vmatpush1.bf16.xpose.msra.mxu0 0
          %1728 = vmatprep.subr.bf16.mxu0 0
          %1729 = vmatpush1.bf16.xpose.msra.mxu0 0
          %1730 = vmatprep.mubr.bf16.mxu0 %v1678
          %1731 = vmatmul.mubr.bf16.gmra.mrb[0].mxu0 %v1677
          %v1732 = vpop.f32.mrb[0].mxu0
          %v1733 = vadd.f32 0.0, %v1732
          %v1734 = vpop.f32.mrb[0].mxu0
          %v1735 = vpop.f32.mrb[0].mxu0
          %v1736 = vpop.f32.mrb[0].mxu0
          %1737 = vdwg.mxu0
          %1738 = vmatprep.subr.bf16.mxu0 %v1693
          %1739 = vmatpush1.bf16.xpose.msra.mxu0 %v1692
          %1740 = vmatprep.subr.bf16.mxu0 0
          %1741 = vmatpush1.bf16.xpose.msra.mxu0 0
          %1742 = vmatprep.subr.bf16.mxu0 0
          %1743 = vmatpush1.bf16.xpose.msra.mxu0 0
          %1744 = vmatprep.subr.bf16.mxu0 0
          %1745 = vmatpush1.bf16.xpose.msra.mxu0 0
          %1746 = vmatprep.subr.bf16.mxu0 0
          %1747 = vmatpush1.bf16.xpose.msra.mxu0 0
          %1748 = vmatprep.subr.bf16.mxu0 0
          %1749 = vmatpush1.bf16.xpose.msra.mxu0 0
          %1750 = vmatprep.subr.bf16.mxu0 0
          %1751 = vmatpush1.bf16.xpose.msra.mxu0 0
          %1752 = vmatprep.subr.bf16.mxu0 0
          %1753 = vmatpush1.bf16.xpose.msra.mxu0 0
          %1754 = vmatprep.subr.bf16.mxu0 0
          %1755 = vmatpush1.bf16.xpose.msra.mxu0 0
          %1756 = vmatprep.subr.bf16.mxu0 0
          %1757 = vmatpush1.bf16.xpose.msra.mxu0 0
          %1758 = vmatprep.subr.bf16.mxu0 0
          %1759 = vmatpush1.bf16.xpose.msra.mxu0 0
          %1760 = vmatprep.subr.bf16.mxu0 0
          %1761 = vmatpush1.bf16.xpose.msra.mxu0 0
          %1762 = vmatprep.subr.bf16.mxu0 0
          %1763 = vmatpush1.bf16.xpose.msra.mxu0 0
          %1764 = vmatprep.subr.bf16.mxu0 0
          %1765 = vmatpush1.bf16.xpose.msra.mxu0 0
          %1766 = vmatprep.subr.bf16.mxu0 0
          %1767 = vmatpush1.bf16.xpose.msra.mxu0 0
          %1768 = vmatprep.subr.bf16.mxu0 0
          %1769 = vmatpush1.bf16.xpose.msra.mxu0 0
          %1770 = vmatprep.mubr.bf16.mxu0 %v1680
          %1771 = vmatmul.mubr.bf16.gmra.mrb[0].mxu0 %v1679
          %v1772 = vpop.f32.mrb[0].mxu0
          %v1773 = vadd.f32 %v1733, %v1772
          %v1774 = vpop.f32.mrb[0].mxu0
          %v1775 = vpop.f32.mrb[0].mxu0
          %v1776 = vpop.f32.mrb[0].mxu0
          %1777 = vdwg.mxu0
          %v1780 = vunpack.c.l.b16 %v1655
          %v1781 = vunpack.c.h.b16 %v1655
          %v1782 = vunpack.c.l.b16 %v1656
          %v1783 = vunpack.c.h.b16 %v1656
          %v1784 = vpack.c.b16 %v1780, %v1780
          %v1785 = vpack.c.b16 %v1781, %v1781
          %v1786 = vpack.c.b16 %v1782, %v1782
          %v1787 = vpack.c.b16 %v1783, %v1783
          %1792 = vmatprep.subr.bf16.mxu0 %v1785
          %1793 = vmatpush1.bf16.xpose.msra.mxu0 %v1784
          %1794 = vmatprep.subr.bf16.mxu0 0
          %1795 = vmatpush1.bf16.xpose.msra.mxu0 0
          %1796 = vmatprep.subr.bf16.mxu0 0
          %1797 = vmatpush1.bf16.xpose.msra.mxu0 0
          %1798 = vmatprep.subr.bf16.mxu0 0
          %1799 = vmatpush1.bf16.xpose.msra.mxu0 0
          %1800 = vmatprep.subr.bf16.mxu0 0
          %1801 = vmatpush1.bf16.xpose.msra.mxu0 0
          %1802 = vmatprep.subr.bf16.mxu0 0
          %1803 = vmatpush1.bf16.xpose.msra.mxu0 0
          %1804 = vmatprep.subr.bf16.mxu0 0
          %1805 = vmatpush1.bf16.xpose.msra.mxu0 0
          %1806 = vmatprep.subr.bf16.mxu0 0
          %1807 = vmatpush1.bf16.xpose.msra.mxu0 0
          %1808 = vmatprep.subr.bf16.mxu0 0
          %1809 = vmatpush1.bf16.xpose.msra.mxu0 0
          %1810 = vmatprep.subr.bf16.mxu0 0
          %1811 = vmatpush1.bf16.xpose.msra.mxu0 0
          %1812 = vmatprep.subr.bf16.mxu0 0
          %1813 = vmatpush1.bf16.xpose.msra.mxu0 0
          %1814 = vmatprep.subr.bf16.mxu0 0
          %1815 = vmatpush1.bf16.xpose.msra.mxu0 0
          %1816 = vmatprep.subr.bf16.mxu0 0
          %1817 = vmatpush1.bf16.xpose.msra.mxu0 0
          %1818 = vmatprep.subr.bf16.mxu0 0
          %1819 = vmatpush1.bf16.xpose.msra.mxu0 0
          %1820 = vmatprep.subr.bf16.mxu0 0
          %1821 = vmatpush1.bf16.xpose.msra.mxu0 0
          %1822 = vmatprep.subr.bf16.mxu0 0
          %1823 = vmatpush1.bf16.xpose.msra.mxu0 0
          %1824 = vmatprep.mubr.bf16.mxu0 %v1652
          %1825 = vmatmul.mubr.bf16.gmra.mrb[0].mxu0 %v1651
          %v1826 = vpop.f32.mrb[0].mxu0
          %v1827 = vadd.f32 %v1773, %v1826
          %v1828 = vpop.f32.mrb[0].mxu0
          %v1829 = vpop.f32.mrb[0].mxu0
          %v1830 = vpop.f32.mrb[0].mxu0
          %1831 = vdwg.mxu0
          %1832 = vmatprep.subr.bf16.mxu0 %v1787
          %1833 = vmatpush1.bf16.xpose.msra.mxu0 %v1786
          %1834 = vmatprep.subr.bf16.mxu0 0
          %1835 = vmatpush1.bf16.xpose.msra.mxu0 0
          %1836 = vmatprep.subr.bf16.mxu0 0
          %1837 = vmatpush1.bf16.xpose.msra.mxu0 0
          %1838 = vmatprep.subr.bf16.mxu0 0
          %1839 = vmatpush1.bf16.xpose.msra.mxu0 0
          %1840 = vmatprep.subr.bf16.mxu0 0
          %1841 = vmatpush1.bf16.xpose.msra.mxu0 0
          %1842 = vmatprep.subr.bf16.mxu0 0
          %1843 = vmatpush1.bf16.xpose.msra.mxu0 0
          %1844 = vmatprep.subr.bf16.mxu0 0
          %1845 = vmatpush1.bf16.xpose.msra.mxu0 0
          %1846 = vmatprep.subr.bf16.mxu0 0
          %1847 = vmatpush1.bf16.xpose.msra.mxu0 0
          %1848 = vmatprep.subr.bf16.mxu0 0
          %1849 = vmatpush1.bf16.xpose.msra.mxu0 0
          %1850 = vmatprep.subr.bf16.mxu0 0
          %1851 = vmatpush1.bf16.xpose.msra.mxu0 0
          %1852 = vmatprep.subr.bf16.mxu0 0
          %1853 = vmatpush1.bf16.xpose.msra.mxu0 0
          %1854 = vmatprep.subr.bf16.mxu0 0
          %1855 = vmatpush1.bf16.xpose.msra.mxu0 0
          %1856 = vmatprep.subr.bf16.mxu0 0
          %1857 = vmatpush1.bf16.xpose.msra.mxu0 0
          %1858 = vmatprep.subr.bf16.mxu0 0
          %1859 = vmatpush1.bf16.xpose.msra.mxu0 0
          %1860 = vmatprep.subr.bf16.mxu0 0
          %1861 = vmatpush1.bf16.xpose.msra.mxu0 0
          %1862 = vmatprep.subr.bf16.mxu0 0
          %1863 = vmatpush1.bf16.xpose.msra.mxu0 0
          %1864 = vmatprep.mubr.bf16.mxu0 %v1654
          %1865 = vmatmul.mubr.bf16.gmra.mrb[0].mxu0 %v1653
          %v1866 = vpop.f32.mrb[0].mxu0
          %v1867 = vadd.f32 %v1827, %v1866
          %v1868 = vpop.f32.mrb[0].mxu0
          %v1869 = vpop.f32.mrb[0].mxu0
          %v1870 = vpop.f32.mrb[0].mxu0
          %1871 = vdwg.mxu0
          %s1872 = scalar_lea.vmem %s5, 32
          %v1873 = vld [vmem:[%s1872] sm:$0x77]
          %v1874 = vld [vmem:[%s1872 + $0x8] sm:$0x77]
          %v1879 = vrot.slane %v1651, 1
          %v1880 = vrot.slane %v1652, 1
          %v1881 = vrot.slane %v1653, 1
          %v1882 = vrot.slane %v1654, 1
          %v1889 = vunpack.c.l.b16 %v1873
          %v1890 = vunpack.c.h.b16 %v1873
          %v1891 = vunpack.c.l.b16 %v1874
          %v1892 = vunpack.c.h.b16 %v1874
          %v1893 = vpack.c.b16 %v1889, %v1889
          %v1894 = vpack.c.b16 %v1890, %v1890
          %v1895 = vpack.c.b16 %v1891, %v1891
          %v1896 = vpack.c.b16 %v1892, %v1892
          %1901 = vmatprep.subr.bf16.mxu0 %v1894
          %1902 = vmatpush1.bf16.xpose.msra.mxu0 %v1893
          %1903 = vmatprep.subr.bf16.mxu0 0
          %1904 = vmatpush1.bf16.xpose.msra.mxu0 0
          %1905 = vmatprep.subr.bf16.mxu0 0
          %1906 = vmatpush1.bf16.xpose.msra.mxu0 0
          %1907 = vmatprep.subr.bf16.mxu0 0
          %1908 = vmatpush1.bf16.xpose.msra.mxu0 0
          %1909 = vmatprep.subr.bf16.mxu0 0
          %1910 = vmatpush1.bf16.xpose.msra.mxu0 0
          %1911 = vmatprep.subr.bf16.mxu0 0
          %1912 = vmatpush1.bf16.xpose.msra.mxu0 0
          %1913 = vmatprep.subr.bf16.mxu0 0
          %1914 = vmatpush1.bf16.xpose.msra.mxu0 0
          %1915 = vmatprep.subr.bf16.mxu0 0
          %1916 = vmatpush1.bf16.xpose.msra.mxu0 0
          %1917 = vmatprep.subr.bf16.mxu0 0
          %1918 = vmatpush1.bf16.xpose.msra.mxu0 0
          %1919 = vmatprep.subr.bf16.mxu0 0
          %1920 = vmatpush1.bf16.xpose.msra.mxu0 0
          %1921 = vmatprep.subr.bf16.mxu0 0
          %1922 = vmatpush1.bf16.xpose.msra.mxu0 0
          %1923 = vmatprep.subr.bf16.mxu0 0
          %1924 = vmatpush1.bf16.xpose.msra.mxu0 0
          %1925 = vmatprep.subr.bf16.mxu0 0
          %1926 = vmatpush1.bf16.xpose.msra.mxu0 0
          %1927 = vmatprep.subr.bf16.mxu0 0
          %1928 = vmatpush1.bf16.xpose.msra.mxu0 0
          %1929 = vmatprep.subr.bf16.mxu0 0
          %1930 = vmatpush1.bf16.xpose.msra.mxu0 0
          %1931 = vmatprep.subr.bf16.mxu0 0
          %1932 = vmatpush1.bf16.xpose.msra.mxu0 0
          %1933 = vmatprep.mubr.bf16.mxu0 %v1880
          %1934 = vmatmul.mubr.bf16.gmra.mrb[0].mxu0 %v1879
          %v1935 = vpop.f32.mrb[0].mxu0
          %v1936 = vadd.f32 0.0, %v1935
          %v1937 = vpop.f32.mrb[0].mxu0
          %v1938 = vpop.f32.mrb[0].mxu0
          %v1939 = vpop.f32.mrb[0].mxu0
          %1940 = vdwg.mxu0
          %1941 = vmatprep.subr.bf16.mxu0 %v1896
          %1942 = vmatpush1.bf16.xpose.msra.mxu0 %v1895
          %1943 = vmatprep.subr.bf16.mxu0 0
          %1944 = vmatpush1.bf16.xpose.msra.mxu0 0
          %1945 = vmatprep.subr.bf16.mxu0 0
          %1946 = vmatpush1.bf16.xpose.msra.mxu0 0
          %1947 = vmatprep.subr.bf16.mxu0 0
          %1948 = vmatpush1.bf16.xpose.msra.mxu0 0
          %1949 = vmatprep.subr.bf16.mxu0 0
          %1950 = vmatpush1.bf16.xpose.msra.mxu0 0
          %1951 = vmatprep.subr.bf16.mxu0 0
          %1952 = vmatpush1.bf16.xpose.msra.mxu0 0
          %1953 = vmatprep.subr.bf16.mxu0 0
          %1954 = vmatpush1.bf16.xpose.msra.mxu0 0
          %1955 = vmatprep.subr.bf16.mxu0 0
          %1956 = vmatpush1.bf16.xpose.msra.mxu0 0
          %1957 = vmatprep.subr.bf16.mxu0 0
          %1958 = vmatpush1.bf16.xpose.msra.mxu0 0
          %1959 = vmatprep.subr.bf16.mxu0 0
          %1960 = vmatpush1.bf16.xpose.msra.mxu0 0
          %1961 = vmatprep.subr.bf16.mxu0 0
          %1962 = vmatpush1.bf16.xpose.msra.mxu0 0
          %1963 = vmatprep.subr.bf16.mxu0 0
          %1964 = vmatpush1.bf16.xpose.msra.mxu0 0
          %1965 = vmatprep.subr.bf16.mxu0 0
          %1966 = vmatpush1.bf16.xpose.msra.mxu0 0
          %1967 = vmatprep.subr.bf16.mxu0 0
          %1968 = vmatpush1.bf16.xpose.msra.mxu0 0
          %1969 = vmatprep.subr.bf16.mxu0 0
          %1970 = vmatpush1.bf16.xpose.msra.mxu0 0
          %1971 = vmatprep.subr.bf16.mxu0 0
          %1972 = vmatpush1.bf16.xpose.msra.mxu0 0
          %1973 = vmatprep.mubr.bf16.mxu0 %v1882
          %1974 = vmatmul.mubr.bf16.gmra.mrb[0].mxu0 %v1881
          %v1975 = vpop.f32.mrb[0].mxu0
          %v1976 = vadd.f32 %v1936, %v1975
          %v1977 = vpop.f32.mrb[0].mxu0
          %v1978 = vpop.f32.mrb[0].mxu0
          %v1979 = vpop.f32.mrb[0].mxu0
          %1980 = vdwg.mxu0
          %v1981 = vadd.f32 %v1867, %v1976
          %v1982 = vld [vmem:[%s6] sm:$0x1]
          %v1984 = vlaneseq
          %v1985 = vshrl.u32 %v1984, 7
          %v1986 = vsub.s32 0, %v1985
          %v1987 = vrot.slane %v1982, %v1986
          %v1989 = vadd.f32 %v1981, %v1987
          %vm1990 = vcmask 41984
          %1991 = vst.msk [vmem:[#allocation4] sm:$0x3] %vm1990, %v1989
        $region97: #{_lambda_.1} parent=84 // pred_fallthru
          _
        // Predicated region
        $region98: #{_lambda_.1} parent=84 // pred_check
          %p1992 = pneg %p198
        $region99: #{_lambda_.1} parent=84 // pred_check_branch
          %1994 = sbr.rel (%p1992) target = $region101
        $region100: #{_lambda_.1} parent=84 // pred_region
          %s1996 = ssub.s32 32, 32
          %1997 = vsyncadd [#allocation5], %s1996
          %s1999 = sshll.u32 [#allocation4], 4
          %s2000 = int_to_ptr.vmem [resolvable:$true] %s1999
          %2002 = dma.vmem_to_hbm [thread:$0]  %s2000, 32, %s7, [#allocation5]
        $region101: #{_lambda_.1} parent=84 // pred_fallthru
          _
        // Predicated region
        $region102: #{_lambda_.1} parent=84 // pred_check
          %p2003 = pneg %p198
        $region103: #{_lambda_.1} parent=84 // pred_check_branch
          %2005 = sbr.rel (%p2003) target = $region105
        $region104: #{_lambda_.1} parent=84 // pred_region
          %2006 = dma.done [#allocation5], 32
        $region105: #{_lambda_.1} parent=84 // pred_fallthru
          _
      $region85: #{_lambda_.1} parent=5 // pred_fallthru
        _
      %p2007 = scmp.le.s32.totalorder 2, %s14
      // Predicated region
      $region106: #{_lambda_.1} parent=5 // pred_check
        %p2008 = pneg %p2007
      $region107: #{_lambda_.1} parent=5 // pred_check_branch
        %2010 = sbr.rel (%p2008) target = $region109
      $region108: #{_lambda_.1} parent=5 // pred_region
        %s2011 = ssub.s32 %s14, 2
      $region109: #{_lambda_.1} parent=5 // pred_fallthru
        _
    $region6: #{_lambda_.1} parent=1 // loop_footer
      %s18 = sadd.s32 1, %s14
    $region7: #{_lambda_.1} parent=1 // loop_footer_branch
      %13 = sbr.rel target = $region3
    $region8: #{_lambda_.1} parent=1 // loop_exit
      _
    %2012 = vsyncpa [#allocation5], 1
    %s2013 = scalar_lea.sflag [#allocation5], 1
    %2014 = vsyncpa %s2013, 1

</llo_original>
